<compile_context>
chip_gen: v7x
topology: tpu7x:2x2x1
jax: 0.10.0
libtpu: 0.0.40
codegen_flags: <defaults>
</compile_context>

<pallas_src>
import jax
import jax.numpy as jnp
from jax import lax
from jax.experimental import pallas as pl
from jax.experimental.pallas import tpu as pltpu

# ---- model config (small, consistent with the module) ----
B = 2          # batch
N = 8          # sequence length
E = 32         # embed_dim
NUM_HEADS = 4
HEAD_DIM = E // NUM_HEADS
HIDDEN = 64    # hidden_dim of FeedForward
SCALE = HEAD_DIM ** (-0.5)
LN_EPS = 1e-5
BN = B * N


def _layernorm(v, gamma, beta):
    # v/gamma/beta: (N, E); biased variance, eps=1e-5 (PyTorch default)
    mu = jnp.mean(v, axis=-1, keepdims=True)
    var = jnp.mean((v - mu) * (v - mu), axis=-1, keepdims=True)
    return (v - mu) * lax.rsqrt(var + LN_EPS) * gamma + beta


def encoder_layer_kernel(
    x_ref,       # (N, E)        this batch's activations
    wqkv_ref,    # (E, 3E)       fused QKV weight (SCALE folded into Q block)
    bqkv_ref,    # (N, 3E)       fused QKV bias, pre-broadcast (SCALE folded into Q)
    wo_ref,      # (E, E)        attn output projection
    w1_ref,      # (E, HIDDEN)   ffn fc1
    bb1_ref,     # (N, HIDDEN)   ffn fc1 bias, pre-broadcast
    w2_ref,      # (HIDDEN, E)   ffn fc2
    vec_ref,     # (6, N, E)     pre-broadcast: [g1, be1, g2, be2, bo, bb2]
    o_ref,       # (N, E)
):
    x = x_ref[...]                                   # (N, E) f32

    g1 = vec_ref[0]
    be1 = vec_ref[1]
    g2 = vec_ref[2]
    be2 = vec_ref[3]
    bo = vec_ref[4]
    bb2 = vec_ref[5]

    # ---- norm1 + fused QKV projection (single MXU matmul, 96-lane result) ----
    xn = _layernorm(x, g1, be1)
    qkv = jnp.dot(xn, wqkv_ref[...], preferred_element_type=jnp.float32) + bqkv_ref[...]

    contract_last = (((1,), (1,)), ((), ()))         # q @ k^T without materializing k.T

    heads = []
    for h in range(NUM_HEADS):
        lo = h * HEAD_DIM
        hi = lo + HEAD_DIM
        qh = qkv[:, lo:hi]                           # scale already folded in
        kh = qkv[:, E + lo:E + hi]
        vh = qkv[:, 2 * E + lo:2 * E + hi]
        s = lax.dot_general(qh, kh, contract_last,
                            preferred_element_type=jnp.float32)      # (N, N)
        m = jnp.max(s, axis=-1, keepdims=True)
        p = jnp.exp(s - m)
        aw = p * pl.reciprocal(jnp.sum(p, axis=-1, keepdims=True), approx=True)
        heads.append(jnp.dot(aw, vh, preferred_element_type=jnp.float32))  # (N, Dh)

    # Lane-concat head outputs, then a single (E, E) output projection:
    # one K=32 MXU push instead of four K=8 pushes + VPU accumulation.
    attn_cat = jnp.concatenate(heads, axis=-1)       # (N, E)
    attn_out = jnp.dot(attn_cat, wo_ref[...],
                       preferred_element_type=jnp.float32) + bo

    x1 = x + attn_out                                # residual 1

    # ---- norm2 + feed-forward ----
    xn2 = _layernorm(x1, g2, be2)
    h1 = jnp.dot(xn2, w1_ref[...], preferred_element_type=jnp.float32) + bb1_ref[...]
    h1 = jnp.maximum(h1, 0.0)                        # ReLU
    ffn = jnp.dot(h1, w2_ref[...], preferred_element_type=jnp.float32) + bb2

    o_ref[...] = x1 + ffn                            # residual 2


def pack_params(p):
    """Layout-only transform: fuse QKV, fold SCALE, pre-broadcast per-row vectors."""
    wq = p["wq"] * SCALE                             # scale applies after bias in the
    bq = p["bq"] * SCALE                             # reference, so fold into both
    wqkv = jnp.concatenate([wq, p["wk"], p["wv"]], axis=1)              # (E, 3E)
    bqkv = jnp.broadcast_to(
        jnp.concatenate([bq, p["bk"], p["bv"]], axis=1), (N, 3 * E))    # (N, 3E)
    bb1 = jnp.broadcast_to(p["bb1"], (N, HIDDEN))                       # (N, HIDDEN)
    vecs = jnp.stack([
        jnp.broadcast_to(p["g1"], (N, E)),
        jnp.broadcast_to(p["be1"], (N, E)),
        jnp.broadcast_to(p["g2"], (N, E)),
        jnp.broadcast_to(p["be2"], (N, E)),
        jnp.broadcast_to(p["bo"], (N, E)),
        jnp.broadcast_to(p["bb2"], (N, E)),
    ], axis=0)                                                          # (6, N, E)
    return wqkv, bqkv, p["wo"], p["w1"], bb1, p["w2"], vecs


def transformer_encoder_layer(x, params):
    """x: (B, N, E) float32; params: dict of natural-layout weight arrays."""
    wqkv, bqkv, wo, w1, bb1, w2, vecs = pack_params(params)
    x2d = x.reshape(BN, E)                           # flattened row slab

    in_specs = [
        pl.BlockSpec((N, E), lambda b: (b, 0)),            # x rows for batch b
        pl.BlockSpec((E, 3 * E), lambda b: (0, 0)),        # wqkv (resident)
        pl.BlockSpec((N, 3 * E), lambda b: (0, 0)),        # bqkv
        pl.BlockSpec((E, E), lambda b: (0, 0)),            # wo
        pl.BlockSpec((E, HIDDEN), lambda b: (0, 0)),       # w1
        pl.BlockSpec((N, HIDDEN), lambda b: (0, 0)),       # bb1
        pl.BlockSpec((HIDDEN, E), lambda b: (0, 0)),       # w2
        pl.BlockSpec((6, N, E), lambda b: (0, 0, 0)),      # packed vectors
    ]
    out_specs = pl.BlockSpec((N, E), lambda b: (b, 0))

    out = pl.pallas_call(
        encoder_layer_kernel,
        out_shape=jax.ShapeDtypeStruct((BN, E), jnp.float32),
        grid_spec=pltpu.PrefetchScalarGridSpec(
            num_scalar_prefetch=0,
            grid=(B,),                                # one batch per program; megacore-parallel
            in_specs=in_specs,
            out_specs=out_specs,
        ),
        compiler_params=pltpu.CompilerParams(
            dimension_semantics=("parallel",)),
    )(x2d, wqkv, bqkv, wo, w1, bb1, w2, vecs)
    return out.reshape(B, N, E)


def init_params(key):
    """Deterministic parameter init in natural layout. Linear weights are (in, out)
    so y = x @ W + b (equivalent to PyTorch's x @ W_pt.T + b). Non-zero biases and
    LN affine params so the packing / scale-folding paths are actually exercised."""
    ks = jax.random.split(key, 16)
    s = 0.05
    return {
        "g1":  1.0 + 0.1 * jax.random.normal(ks[0], (1, E), jnp.float32),
        "be1": 0.1 * jax.random.normal(ks[1], (1, E), jnp.float32),
        "wq":  s * jax.random.normal(ks[2], (E, E), jnp.float32),
        "bq":  0.1 * jax.random.normal(ks[3], (1, E), jnp.float32),
        "wk":  s * jax.random.normal(ks[4], (E, E), jnp.float32),
        "bk":  0.1 * jax.random.normal(ks[5], (1, E), jnp.float32),
        "wv":  s * jax.random.normal(ks[6], (E, E), jnp.float32),
        "bv":  0.1 * jax.random.normal(ks[7], (1, E), jnp.float32),
        "wo":  s * jax.random.normal(ks[8], (E, E), jnp.float32),
        "bo":  0.1 * jax.random.normal(ks[9], (1, E), jnp.float32),
        "g2":  1.0 + 0.1 * jax.random.normal(ks[10], (1, E), jnp.float32),
        "be2": 0.1 * jax.random.normal(ks[11], (1, E), jnp.float32),
        "w1":  s * jax.random.normal(ks[12], (E, HIDDEN), jnp.float32),
        "bb1": 0.1 * jax.random.normal(ks[13], (1, HIDDEN), jnp.float32),
        "w2":  s * jax.random.normal(ks[14], (HIDDEN, E), jnp.float32),
        "bb2": 0.1 * jax.random.normal(ks[15], (1, E), jnp.float32),
    }


def reference(x, p):
    """Pure-JAX reference (natural params, exact softmax) for a sanity check."""
    def ln(v, g, b):
        mu = jnp.mean(v, -1, keepdims=True)
        var = jnp.mean((v - mu) ** 2, -1, keepdims=True)
        return (v - mu) / jnp.sqrt(var + LN_EPS) * g + b

    xn = ln(x, p["g1"], p["be1"])
    q = xn @ p["wq"] + p["bq"]
    k = xn @ p["wk"] + p["bk"]
    v = xn @ p["wv"] + p["bv"]
    q = q.reshape(B, N, NUM_HEADS, HEAD_DIM).transpose(0, 2, 1, 3) * SCALE
    k = k.reshape(B, N, NUM_HEADS, HEAD_DIM).transpose(0, 2, 1, 3)
    v = v.reshape(B, N, NUM_HEADS, HEAD_DIM).transpose(0, 2, 1, 3)
    s = jnp.einsum("bhnd,bhmd->bhnm", q, k)
    w = jax.nn.softmax(s, axis=-1)
    a = jnp.einsum("bhnm,bhmd->bhnd", w, v)
    a = a.transpose(0, 2, 1, 3).reshape(B, N, E)
    attn_out = a @ p["wo"] + p["bo"]
    x1 = x + attn_out
    xn2 = ln(x1, p["g2"], p["be2"])
    h1 = jax.nn.relu(xn2 @ p["w1"] + p["bb1"])
    ffn = h1 @ p["w2"] + p["bb2"]
    return x1 + ffn


if __name__ == "__main__":
    key = jax.random.PRNGKey(0)
    kx, kp = jax.random.split(key)
    x = jax.random.normal(kx, (B, N, E), jnp.float32)
    params = init_params(kp)

    out = transformer_encoder_layer(x, params)
    out = jax.block_until_ready(out)

    ref = reference(x, params)
    assert out.shape == (B, N, E)
    # slightly looser than 1e-4 to absorb the approx-reciprocal softmax denom
    assert jnp.allclose(out, ref, atol=2e-3, rtol=2e-3), "mismatch vs reference"

    print("KERNEL_OK")
</pallas_src>

<mosaic_0001>
module attributes {stable_mosaic.version = 11 : i64} {
  func.func @encoder_layer_kernel(%arg0: i32, %arg1: memref<8x32xf32, #tpu.memory_space<vmem>>, %arg2: memref<32x96xf32, #tpu.memory_space<vmem>>, %arg3: memref<8x96xf32, #tpu.memory_space<vmem>>, %arg4: memref<32x32xf32, #tpu.memory_space<vmem>>, %arg5: memref<32x64xf32, #tpu.memory_space<vmem>>, %arg6: memref<8x64xf32, #tpu.memory_space<vmem>>, %arg7: memref<64x32xf32, #tpu.memory_space<vmem>>, %arg8: memref<6x8x32xf32, #tpu.memory_space<vmem>>, %arg9: memref<8x32xf32, #tpu.memory_space<vmem>>) attributes {dimension_semantics = [#tpu.dimension_semantics<parallel>], iteration_bounds = array<i64: 2>, scalar_prefetch = 0 : i64, scratch_operands = 0 : i64, tpu.core_type = #tpu.core_type<tc>, window_params = [{transform_indices = @transform_0, window_bounds = array<i64: 8, 32>}, {pipeline_mode = #tpu.pipeline_mode<synchronous>, transform_indices = @transform_1, window_bounds = array<i64: 32, 96>}, {pipeline_mode = #tpu.pipeline_mode<synchronous>, transform_indices = @transform_2, window_bounds = array<i64: 8, 96>}, {pipeline_mode = #tpu.pipeline_mode<synchronous>, transform_indices = @transform_3, window_bounds = array<i64: 32, 32>}, {pipeline_mode = #tpu.pipeline_mode<synchronous>, transform_indices = @transform_4, window_bounds = array<i64: 32, 64>}, {pipeline_mode = #tpu.pipeline_mode<synchronous>, transform_indices = @transform_5, window_bounds = array<i64: 8, 64>}, {pipeline_mode = #tpu.pipeline_mode<synchronous>, transform_indices = @transform_6, window_bounds = array<i64: 64, 32>}, {pipeline_mode = #tpu.pipeline_mode<synchronous>, transform_indices = @transform_7, window_bounds = array<i64: 6, 8, 32>}, {transform_indices = @transform_8, window_bounds = array<i64: 8, 32>}]} {
    %c0 = arith.constant 0 : index
    %c0_0 = arith.constant 0 : index
    %0 = vector.load %arg1[%c0, %c0_0] : memref<8x32xf32, #tpu.memory_space<vmem>>, vector<8x32xf32>
    %c0_1 = arith.constant 0 : index
    %c0_2 = arith.constant 0 : index
    %c0_3 = arith.constant 0 : index
    %1 = vector.load %arg8[%c0_1, %c0_2, %c0_3] : memref<6x8x32xf32, #tpu.memory_space<vmem>>, vector<1x8x32xf32>
    %2 = vector.shape_cast %1 : vector<1x8x32xf32> to vector<8x32xf32>
    %c1 = arith.constant 1 : index
    %c0_4 = arith.constant 0 : index
    %c0_5 = arith.constant 0 : index
    %3 = vector.load %arg8[%c1, %c0_4, %c0_5] : memref<6x8x32xf32, #tpu.memory_space<vmem>>, vector<1x8x32xf32>
    %4 = vector.shape_cast %3 : vector<1x8x32xf32> to vector<8x32xf32>
    %c2 = arith.constant 2 : index
    %c0_6 = arith.constant 0 : index
    %c0_7 = arith.constant 0 : index
    %5 = vector.load %arg8[%c2, %c0_6, %c0_7] : memref<6x8x32xf32, #tpu.memory_space<vmem>>, vector<1x8x32xf32>
    %6 = vector.shape_cast %5 : vector<1x8x32xf32> to vector<8x32xf32>
    %c3 = arith.constant 3 : index
    %c0_8 = arith.constant 0 : index
    %c0_9 = arith.constant 0 : index
    %7 = vector.load %arg8[%c3, %c0_8, %c0_9] : memref<6x8x32xf32, #tpu.memory_space<vmem>>, vector<1x8x32xf32>
    %8 = vector.shape_cast %7 : vector<1x8x32xf32> to vector<8x32xf32>
    %c4 = arith.constant 4 : index
    %c0_10 = arith.constant 0 : index
    %c0_11 = arith.constant 0 : index
    %9 = vector.load %arg8[%c4, %c0_10, %c0_11] : memref<6x8x32xf32, #tpu.memory_space<vmem>>, vector<1x8x32xf32>
    %10 = vector.shape_cast %9 : vector<1x8x32xf32> to vector<8x32xf32>
    %c5 = arith.constant 5 : index
    %c0_12 = arith.constant 0 : index
    %c0_13 = arith.constant 0 : index
    %11 = vector.load %arg8[%c5, %c0_12, %c0_13] : memref<6x8x32xf32, #tpu.memory_space<vmem>>, vector<1x8x32xf32>
    %12 = vector.shape_cast %11 : vector<1x8x32xf32> to vector<8x32xf32>
    %cst = arith.constant dense<0.000000e+00> : vector<8xf32>
    %13 = vector.multi_reduction <add>, %0, %cst [1] : vector<8x32xf32> to vector<8xf32>
    %14 = vector.shape_cast %13 : vector<8xf32> to vector<8x1xf32>
    %cst_14 = arith.constant 3.200000e+01 : f32
    %15 = vector.broadcast %cst_14 : f32 to vector<8x1xf32>
    %16 = arith.divf %14, %15 : vector<8x1xf32>
    %17 = vector.broadcast %16 : vector<8x1xf32> to vector<8x32xf32>
    %18 = arith.subf %0, %17 : vector<8x32xf32>
    %19 = vector.broadcast %16 : vector<8x1xf32> to vector<8x32xf32>
    %20 = arith.subf %0, %19 : vector<8x32xf32>
    %21 = arith.mulf %18, %20 : vector<8x32xf32>
    %cst_15 = arith.constant dense<0.000000e+00> : vector<8xf32>
    %22 = vector.multi_reduction <add>, %21, %cst_15 [1] : vector<8x32xf32> to vector<8xf32>
    %23 = vector.shape_cast %22 : vector<8xf32> to vector<8x1xf32>
    %cst_16 = arith.constant 3.200000e+01 : f32
    %24 = vector.broadcast %cst_16 : f32 to vector<8x1xf32>
    %25 = arith.divf %23, %24 : vector<8x1xf32>
    %26 = vector.broadcast %16 : vector<8x1xf32> to vector<8x32xf32>
    %27 = arith.subf %0, %26 : vector<8x32xf32>
    %cst_17 = arith.constant 9.99999974E-6 : f32
    %28 = vector.broadcast %cst_17 : f32 to vector<8x1xf32>
    %29 = arith.addf %25, %28 : vector<8x1xf32>
    %30 = math.rsqrt %29 : vector<8x1xf32>
    %31 = vector.broadcast %30 : vector<8x1xf32> to vector<8x32xf32>
    %32 = arith.mulf %27, %31 : vector<8x32xf32>
    %33 = arith.mulf %32, %2 : vector<8x32xf32>
    %34 = arith.addf %33, %4 : vector<8x32xf32>
    %c0_18 = arith.constant 0 : index
    %c0_19 = arith.constant 0 : index
    %35 = vector.load %arg2[%c0_18, %c0_19] : memref<32x96xf32, #tpu.memory_space<vmem>>, vector<32x96xf32>
    %cst_20 = arith.constant dense<0.000000e+00> : vector<8x96xf32>
    %36 = tpu.matmul %34, %35, %cst_20 {dimension_numbers = #tpu.dot_dimension_numbers<[1], [0], [0], [1], [0, 0, 1, 1], [], []>} : vector<8x32xf32>, vector<32x96xf32>, vector<8x96xf32> -> vector<8x96xf32>
    %c0_21 = arith.constant 0 : index
    %c0_22 = arith.constant 0 : index
    %37 = vector.load %arg3[%c0_21, %c0_22] : memref<8x96xf32, #tpu.memory_space<vmem>>, vector<8x96xf32>
    %38 = arith.addf %36, %37 : vector<8x96xf32>
    %39 = vector.extract_strided_slice %38 {offsets = [0, 0], sizes = [8, 8], strides = [1, 1]} : vector<8x96xf32> to vector<8x8xf32>
    %40 = vector.extract_strided_slice %38 {offsets = [0, 32], sizes = [8, 8], strides = [1, 1]} : vector<8x96xf32> to vector<8x8xf32>
    %41 = vector.extract_strided_slice %38 {offsets = [0, 64], sizes = [8, 8], strides = [1, 1]} : vector<8x96xf32> to vector<8x8xf32>
    %cst_23 = arith.constant dense<0.000000e+00> : vector<8x8xf32>
    %42 = tpu.matmul %39, %40, %cst_23 {dimension_numbers = #tpu.dot_dimension_numbers<[1], [1], [0], [0], [0, 0, 1, 0], [], []>} : vector<8x8xf32>, vector<8x8xf32>, vector<8x8xf32> -> vector<8x8xf32>
    %cst_24 = arith.constant dense<0xFF800000> : vector<8xf32>
    %43 = vector.multi_reduction <maximumf>, %42, %cst_24 [1] : vector<8x8xf32> to vector<8xf32>
    %44 = vector.shape_cast %43 : vector<8xf32> to vector<8x1xf32>
    %45 = vector.broadcast %44 : vector<8x1xf32> to vector<8x8xf32>
    %46 = arith.subf %42, %45 : vector<8x8xf32>
    %47 = math.exp %46 : vector<8x8xf32>
    %cst_25 = arith.constant dense<0.000000e+00> : vector<8xf32>
    %48 = vector.multi_reduction <add>, %47, %cst_25 [1] : vector<8x8xf32> to vector<8xf32>
    %49 = vector.shape_cast %48 : vector<8xf32> to vector<8x1xf32>
    %50 = tpu.reciprocal %49 {approx = true} : vector<8x1xf32> -> vector<8x1xf32>
    %51 = vector.broadcast %50 : vector<8x1xf32> to vector<8x8xf32>
    %52 = arith.mulf %47, %51 : vector<8x8xf32>
    %cst_26 = arith.constant dense<0.000000e+00> : vector<8x8xf32>
    %53 = tpu.matmul %52, %41, %cst_26 {dimension_numbers = #tpu.dot_dimension_numbers<[1], [0], [0], [1], [0, 0, 1, 1], [], []>} : vector<8x8xf32>, vector<8x8xf32>, vector<8x8xf32> -> vector<8x8xf32>
    %54 = vector.extract_strided_slice %38 {offsets = [0, 8], sizes = [8, 8], strides = [1, 1]} : vector<8x96xf32> to vector<8x8xf32>
    %55 = vector.extract_strided_slice %38 {offsets = [0, 40], sizes = [8, 8], strides = [1, 1]} : vector<8x96xf32> to vector<8x8xf32>
    %56 = vector.extract_strided_slice %38 {offsets = [0, 72], sizes = [8, 8], strides = [1, 1]} : vector<8x96xf32> to vector<8x8xf32>
    %cst_27 = arith.constant dense<0.000000e+00> : vector<8x8xf32>
    %57 = tpu.matmul %54, %55, %cst_27 {dimension_numbers = #tpu.dot_dimension_numbers<[1], [1], [0], [0], [0, 0, 1, 0], [], []>} : vector<8x8xf32>, vector<8x8xf32>, vector<8x8xf32> -> vector<8x8xf32>
    %cst_28 = arith.constant dense<0xFF800000> : vector<8xf32>
    %58 = vector.multi_reduction <maximumf>, %57, %cst_28 [1] : vector<8x8xf32> to vector<8xf32>
    %59 = vector.shape_cast %58 : vector<8xf32> to vector<8x1xf32>
    %60 = vector.broadcast %59 : vector<8x1xf32> to vector<8x8xf32>
    %61 = arith.subf %57, %60 : vector<8x8xf32>
    %62 = math.exp %61 : vector<8x8xf32>
    %cst_29 = arith.constant dense<0.000000e+00> : vector<8xf32>
    %63 = vector.multi_reduction <add>, %62, %cst_29 [1] : vector<8x8xf32> to vector<8xf32>
    %64 = vector.shape_cast %63 : vector<8xf32> to vector<8x1xf32>
    %65 = tpu.reciprocal %64 {approx = true} : vector<8x1xf32> -> vector<8x1xf32>
    %66 = vector.broadcast %65 : vector<8x1xf32> to vector<8x8xf32>
    %67 = arith.mulf %62, %66 : vector<8x8xf32>
    %cst_30 = arith.constant dense<0.000000e+00> : vector<8x8xf32>
    %68 = tpu.matmul %67, %56, %cst_30 {dimension_numbers = #tpu.dot_dimension_numbers<[1], [0], [0], [1], [0, 0, 1, 1], [], []>} : vector<8x8xf32>, vector<8x8xf32>, vector<8x8xf32> -> vector<8x8xf32>
    %69 = vector.extract_strided_slice %38 {offsets = [0, 16], sizes = [8, 8], strides = [1, 1]} : vector<8x96xf32> to vector<8x8xf32>
    %70 = vector.extract_strided_slice %38 {offsets = [0, 48], sizes = [8, 8], strides = [1, 1]} : vector<8x96xf32> to vector<8x8xf32>
    %71 = vector.extract_strided_slice %38 {offsets = [0, 80], sizes = [8, 8], strides = [1, 1]} : vector<8x96xf32> to vector<8x8xf32>
    %cst_31 = arith.constant dense<0.000000e+00> : vector<8x8xf32>
    %72 = tpu.matmul %69, %70, %cst_31 {dimension_numbers = #tpu.dot_dimension_numbers<[1], [1], [0], [0], [0, 0, 1, 0], [], []>} : vector<8x8xf32>, vector<8x8xf32>, vector<8x8xf32> -> vector<8x8xf32>
    %cst_32 = arith.constant dense<0xFF800000> : vector<8xf32>
    %73 = vector.multi_reduction <maximumf>, %72, %cst_32 [1] : vector<8x8xf32> to vector<8xf32>
    %74 = vector.shape_cast %73 : vector<8xf32> to vector<8x1xf32>
    %75 = vector.broadcast %74 : vector<8x1xf32> to vector<8x8xf32>
    %76 = arith.subf %72, %75 : vector<8x8xf32>
    %77 = math.exp %76 : vector<8x8xf32>
    %cst_33 = arith.constant dense<0.000000e+00> : vector<8xf32>
    %78 = vector.multi_reduction <add>, %77, %cst_33 [1] : vector<8x8xf32> to vector<8xf32>
    %79 = vector.shape_cast %78 : vector<8xf32> to vector<8x1xf32>
    %80 = tpu.reciprocal %79 {approx = true} : vector<8x1xf32> -> vector<8x1xf32>
    %81 = vector.broadcast %80 : vector<8x1xf32> to vector<8x8xf32>
    %82 = arith.mulf %77, %81 : vector<8x8xf32>
    %cst_34 = arith.constant dense<0.000000e+00> : vector<8x8xf32>
    %83 = tpu.matmul %82, %71, %cst_34 {dimension_numbers = #tpu.dot_dimension_numbers<[1], [0], [0], [1], [0, 0, 1, 1], [], []>} : vector<8x8xf32>, vector<8x8xf32>, vector<8x8xf32> -> vector<8x8xf32>
    %84 = vector.extract_strided_slice %38 {offsets = [0, 24], sizes = [8, 8], strides = [1, 1]} : vector<8x96xf32> to vector<8x8xf32>
    %85 = vector.extract_strided_slice %38 {offsets = [0, 56], sizes = [8, 8], strides = [1, 1]} : vector<8x96xf32> to vector<8x8xf32>
    %86 = vector.extract_strided_slice %38 {offsets = [0, 88], sizes = [8, 8], strides = [1, 1]} : vector<8x96xf32> to vector<8x8xf32>
    %cst_35 = arith.constant dense<0.000000e+00> : vector<8x8xf32>
    %87 = tpu.matmul %84, %85, %cst_35 {dimension_numbers = #tpu.dot_dimension_numbers<[1], [1], [0], [0], [0, 0, 1, 0], [], []>} : vector<8x8xf32>, vector<8x8xf32>, vector<8x8xf32> -> vector<8x8xf32>
    %cst_36 = arith.constant dense<0xFF800000> : vector<8xf32>
    %88 = vector.multi_reduction <maximumf>, %87, %cst_36 [1] : vector<8x8xf32> to vector<8xf32>
    %89 = vector.shape_cast %88 : vector<8xf32> to vector<8x1xf32>
    %90 = vector.broadcast %89 : vector<8x1xf32> to vector<8x8xf32>
    %91 = arith.subf %87, %90 : vector<8x8xf32>
    %92 = math.exp %91 : vector<8x8xf32>
    %cst_37 = arith.constant dense<0.000000e+00> : vector<8xf32>
    %93 = vector.multi_reduction <add>, %92, %cst_37 [1] : vector<8x8xf32> to vector<8xf32>
    %94 = vector.shape_cast %93 : vector<8xf32> to vector<8x1xf32>
    %95 = tpu.reciprocal %94 {approx = true} : vector<8x1xf32> -> vector<8x1xf32>
    %96 = vector.broadcast %95 : vector<8x1xf32> to vector<8x8xf32>
    %97 = arith.mulf %92, %96 : vector<8x8xf32>
    %cst_38 = arith.constant dense<0.000000e+00> : vector<8x8xf32>
    %98 = tpu.matmul %97, %86, %cst_38 {dimension_numbers = #tpu.dot_dimension_numbers<[1], [0], [0], [1], [0, 0, 1, 1], [], []>} : vector<8x8xf32>, vector<8x8xf32>, vector<8x8xf32> -> vector<8x8xf32>
    %99 = tpu.concatenate %53, %68, %83, %98 in 1 : vector<8x8xf32>, vector<8x8xf32>, vector<8x8xf32>, vector<8x8xf32> -> vector<8x32xf32>
    %c0_39 = arith.constant 0 : index
    %c0_40 = arith.constant 0 : index
    %100 = vector.load %arg4[%c0_39, %c0_40] : memref<32x32xf32, #tpu.memory_space<vmem>>, vector<32x32xf32>
    %cst_41 = arith.constant dense<0.000000e+00> : vector<8x32xf32>
    %101 = tpu.matmul %99, %100, %cst_41 {dimension_numbers = #tpu.dot_dimension_numbers<[1], [0], [0], [1], [0, 0, 1, 1], [], []>} : vector<8x32xf32>, vector<32x32xf32>, vector<8x32xf32> -> vector<8x32xf32>
    %102 = arith.addf %101, %10 : vector<8x32xf32>
    %103 = arith.addf %0, %102 : vector<8x32xf32>
    %cst_42 = arith.constant dense<0.000000e+00> : vector<8xf32>
    %104 = vector.multi_reduction <add>, %103, %cst_42 [1] : vector<8x32xf32> to vector<8xf32>
    %105 = vector.shape_cast %104 : vector<8xf32> to vector<8x1xf32>
    %cst_43 = arith.constant 3.200000e+01 : f32
    %106 = vector.broadcast %cst_43 : f32 to vector<8x1xf32>
    %107 = arith.divf %105, %106 : vector<8x1xf32>
    %108 = vector.broadcast %107 : vector<8x1xf32> to vector<8x32xf32>
    %109 = arith.subf %103, %108 : vector<8x32xf32>
    %110 = vector.broadcast %107 : vector<8x1xf32> to vector<8x32xf32>
    %111 = arith.subf %103, %110 : vector<8x32xf32>
    %112 = arith.mulf %109, %111 : vector<8x32xf32>
    %cst_44 = arith.constant dense<0.000000e+00> : vector<8xf32>
    %113 = vector.multi_reduction <add>, %112, %cst_44 [1] : vector<8x32xf32> to vector<8xf32>
    %114 = vector.shape_cast %113 : vector<8xf32> to vector<8x1xf32>
    %cst_45 = arith.constant 3.200000e+01 : f32
    %115 = vector.broadcast %cst_45 : f32 to vector<8x1xf32>
    %116 = arith.divf %114, %115 : vector<8x1xf32>
    %117 = vector.broadcast %107 : vector<8x1xf32> to vector<8x32xf32>
    %118 = arith.subf %103, %117 : vector<8x32xf32>
    %cst_46 = arith.constant 9.99999974E-6 : f32
    %119 = vector.broadcast %cst_46 : f32 to vector<8x1xf32>
    %120 = arith.addf %116, %119 : vector<8x1xf32>
    %121 = math.rsqrt %120 : vector<8x1xf32>
    %122 = vector.broadcast %121 : vector<8x1xf32> to vector<8x32xf32>
    %123 = arith.mulf %118, %122 : vector<8x32xf32>
    %124 = arith.mulf %123, %6 : vector<8x32xf32>
    %125 = arith.addf %124, %8 : vector<8x32xf32>
    %c0_47 = arith.constant 0 : index
    %c0_48 = arith.constant 0 : index
    %126 = vector.load %arg5[%c0_47, %c0_48] : memref<32x64xf32, #tpu.memory_space<vmem>>, vector<32x64xf32>
    %cst_49 = arith.constant dense<0.000000e+00> : vector<8x64xf32>
    %127 = tpu.matmul %125, %126, %cst_49 {dimension_numbers = #tpu.dot_dimension_numbers<[1], [0], [0], [1], [0, 0, 1, 1], [], []>} : vector<8x32xf32>, vector<32x64xf32>, vector<8x64xf32> -> vector<8x64xf32>
    %c0_50 = arith.constant 0 : index
    %c0_51 = arith.constant 0 : index
    %128 = vector.load %arg6[%c0_50, %c0_51] : memref<8x64xf32, #tpu.memory_space<vmem>>, vector<8x64xf32>
    %129 = arith.addf %127, %128 : vector<8x64xf32>
    %cst_52 = arith.constant 0.000000e+00 : f32
    %130 = vector.broadcast %cst_52 : f32 to vector<8x64xf32>
    %131 = arith.maximumf %129, %130 : vector<8x64xf32>
    %c0_53 = arith.constant 0 : index
    %c0_54 = arith.constant 0 : index
    %132 = vector.load %arg7[%c0_53, %c0_54] : memref<64x32xf32, #tpu.memory_space<vmem>>, vector<64x32xf32>
    %cst_55 = arith.constant dense<0.000000e+00> : vector<8x32xf32>
    %133 = tpu.matmul %131, %132, %cst_55 {dimension_numbers = #tpu.dot_dimension_numbers<[1], [0], [0], [1], [0, 0, 1, 1], [], []>} : vector<8x64xf32>, vector<64x32xf32>, vector<8x32xf32> -> vector<8x32xf32>
    %134 = arith.addf %133, %12 : vector<8x32xf32>
    %135 = arith.addf %103, %134 : vector<8x32xf32>
    %c0_56 = arith.constant 0 : index
    %c0_57 = arith.constant 0 : index
    %136 = vector.load %arg9[%c0_56, %c0_57] : memref<8x32xf32, #tpu.memory_space<vmem>>, vector<8x32xf32>
    tpu.vector_store %arg9[%c0_56, %c0_57], %135 {strides = array<i32>} : memref<8x32xf32, #tpu.memory_space<vmem>>, vector<8x32xf32>,
    return
  }
  func.func @transform_0(%arg0: i32) -> (i32, i32) {
    %c0_i32 = arith.constant 0 : i32
    %c0_i32_0 = arith.constant 0 : i32
    return %arg0, %c0_i32 : i32, i32
  }
  func.func @transform_1(%arg0: i32) -> (i32, i32) {
    %c0_i32 = arith.constant 0 : i32
    %c0_i32_0 = arith.constant 0 : i32
    %c0_i32_1 = arith.constant 0 : i32
    return %c0_i32, %c0_i32_0 : i32, i32
  }
  func.func @transform_2(%arg0: i32) -> (i32, i32) {
    %c0_i32 = arith.constant 0 : i32
    %c0_i32_0 = arith.constant 0 : i32
    %c0_i32_1 = arith.constant 0 : i32
    return %c0_i32, %c0_i32_0 : i32, i32
  }
  func.func @transform_3(%arg0: i32) -> (i32, i32) {
    %c0_i32 = arith.constant 0 : i32
    %c0_i32_0 = arith.constant 0 : i32
    %c0_i32_1 = arith.constant 0 : i32
    return %c0_i32, %c0_i32_0 : i32, i32
  }
  func.func @transform_4(%arg0: i32) -> (i32, i32) {
    %c0_i32 = arith.constant 0 : i32
    %c0_i32_0 = arith.constant 0 : i32
    %c0_i32_1 = arith.constant 0 : i32
    return %c0_i32, %c0_i32_0 : i32, i32
  }
  func.func @transform_5(%arg0: i32) -> (i32, i32) {
    %c0_i32 = arith.constant 0 : i32
    %c0_i32_0 = arith.constant 0 : i32
    %c0_i32_1 = arith.constant 0 : i32
    return %c0_i32, %c0_i32_0 : i32, i32
  }
  func.func @transform_6(%arg0: i32) -> (i32, i32) {
    %c0_i32 = arith.constant 0 : i32
    %c0_i32_0 = arith.constant 0 : i32
    %c0_i32_1 = arith.constant 0 : i32
    return %c0_i32, %c0_i32_0 : i32, i32
  }
  func.func @transform_7(%arg0: i32) -> (i32, i32, i32) {
    %c0_i32 = arith.constant 0 : i32
    %c0_i32_0 = arith.constant 0 : i32
    %c0_i32_1 = arith.constant 0 : i32
    %c0_i32_2 = arith.constant 0 : i32
    return %c0_i32, %c0_i32_0, %c0_i32_1 : i32, i32, i32
  }
  func.func @transform_8(%arg0: i32) -> (i32, i32) {
    %c0_i32 = arith.constant 0 : i32
    %c0_i32_0 = arith.constant 0 : i32
    return %arg0, %c0_i32 : i32, i32
  }
}

</mosaic_0001>

<llo_original>
// kernel: tpu_custom_call.1
$region0: #{tpu_custom_call.1}
  #allocation0 [shape = 'u32[]', space=smem, size = 0x4, offset = 0x4, fixed_abs, tag = 'smem constant byte address 0x4 - core index']
  #allocation1 [shape = 'u32[144,128]{1,0:T(1,128)}', space=vmem, size = 0x12000, scoped, tag = 'internal scratch']
  %s0 = inlined_call_operand.vmem [shape: f32[16,32], index: 0, kind: input, shape index: {}]
  %s1 = inlined_call_operand.vmem [shape: f32[32,96], index: 1, kind: input, shape index: {}]
  %s2 = inlined_call_operand.hbm [shape: f32[8,96], index: 2, kind: input, shape index: {}]
  %s3 = inlined_call_operand.hbm [shape: f32[32,32], index: 3, kind: input, shape index: {}]
  %s4 = inlined_call_operand.hbm [shape: f32[32,64], index: 4, kind: input, shape index: {}]
  %s5 = inlined_call_operand.vmem [shape: f32[8,64], index: 5, kind: input, shape index: {}]
  %s6 = inlined_call_operand.vmem [shape: f32[64,32], index: 6, kind: input, shape index: {}]
  %s7 = inlined_call_operand.vmem [shape: f32[6,8,32], index: 7, kind: input, shape index: {}]
  %s8 = inlined_call_operand.hbm [shape: f32[16,32], index: 8, kind: output, shape index: {}]
  %s9 = sld [smem:[#allocation0]]
  $region77: #{tpu_custom_call.1} parent=0
    _
  %s11 = ssub.s32 1, %s9
  %s12 = scalar_select 0, %s11, %s9
  $region1: #{tpu_custom_call.1} parent=0
    #allocation2 [shape = 'u8[4096]{0}', space=vmem, size = 0x1000, scoped, tag = 'input window, operand 2, single buffered']
    #allocation3 [shape = 's32[2]{0}', space=sflag, size = 0x8, scoped, tag = 'scoped memory for tpu_custom_call.1']
    #allocation4 [shape = 's32[2]{0}', space=sflag, size = 0x8, scoped, tag = 'scoped memory for tpu_custom_call.1']
    #allocation5 [shape = 'u8[16384]{0}', space=vmem, size = 0x4000, scoped, tag = 'input window, operand 3, single buffered']
    #allocation6 [shape = 's32[1]{0}', space=sflag, size = 0x4, scoped, tag = 'scoped memory for tpu_custom_call.1']
    #allocation7 [shape = 'u8[16384]{0}', space=vmem, size = 0x4000, scoped, tag = 'input window, operand 4, single buffered']
    #allocation8 [shape = 'u8[8192]{0}', space=vmem, size = 0x2000, scoped, tag = 'output window, operand 0']
    %13 = vsyncpa [#allocation3], 0
    %14 = vsyncpa [#allocation6], 0
    %15 = vsyncpa [#allocation4], 0
    %s16 = scalar_lea.sflag [#allocation4], 1
    %17 = vsyncpa %s16, 0
    loop: start=0, step=1, limit=4
    $region2: #{tpu_custom_call.1} parent=1 // loop_pre_header
      _
    $region3: #{tpu_custom_call.1} parent=1 // loop_header
      %s19 = sphi 0, %s23
      %p20 = scmp.ge.s32.totalorder %s19, 4
      %s29 = sphi 0, %s31
      %s32 = sphi 0, %s29
      %s33 = sphi 0, %s32
      %s49 = sphi 0, %s33
      %s53 = sphi 0, %s53
      %s55 = sphi 0, %s53
      %s56 = sphi 0, %s55
      %s70 = sphi 0, %s56
      %s74 = sphi 0, %s74
      %s76 = sphi 0, %s74
      %s77 = sphi 0, %s76
      %s91 = sphi 0, %s77
      %s95 = sphi 0, %s95
      %s97 = sphi 0, %s95
      %s98 = sphi 0, %s97
      %s112 = sphi 0, %s98
      %s116 = sphi 0, %s116
      %s118 = sphi 0, %s116
      %s119 = sphi 0, %s118
      %s133 = sphi 0, %s119
      %s137 = sphi 0, %s137
      %s139 = sphi 0, %s137
      %s140 = sphi 0, %s139
      %s154 = sphi 0, %s140
      %s158 = sphi 0, %s158
      %s160 = sphi 0, %s158
      %s161 = sphi 0, %s160
      %s175 = sphi 0, %s161
      %s179 = sphi 0, %s179
      %s181 = sphi 0, %s179
      %s182 = sphi 0, %s181
      %s196 = sphi 0, %s182
      %s202 = sphi 0, %s204
      %s205 = sphi 0, %s202
      %s206 = sphi 0, %s205
      %s222 = sphi 0, %s206
    $region4: #{tpu_custom_call.1} parent=1 // loop_header_branch
      %22 = sbr.rel (%p20) target = $region8
    $region5: #{tpu_custom_call.1} parent=1 // loop_body
      %s24 = ssub.s32 %s19, 1
      %s25 = ssub.s32 %s19, 2
      %s26 = sadd.s32 %s19, 1
      %s27 = ssub.s32 %s19, %s26
      %p28 = scmp.eq.s32.totalorder %s27, 0
      %s30 = sadd.s32 %s29, 1
      %s31 = scalar_select %p28, %s29, %s30
      %p34 = pneg %p28
      %p35 = scmp.eq.s32.totalorder %s19, 1
      %p36 = por %p34, %p35
      %p37 = scmp.ne.s32.totalorder %s29, %s32
      %p38 = scmp.eq.s32.totalorder %s19, 0
      %p39 = por %p37, %p38
      %p40 = scmp.ne.s32.totalorder %s29, %s32
      %p41 = scmp.eq.s32.totalorder %s24, 1
      %p42 = por %p40, %p41
      %p43 = scmp.ne.s32.totalorder %s32, %s33
      %p44 = scmp.eq.s32.totalorder %s24, 0
      %p45 = por %p43, %p44
      %p46 = scmp.ne.s32.totalorder %s32, %s33
      %p47 = scmp.eq.s32.totalorder %s25, 1
      %p48 = por %p46, %p47
      %p50 = scmp.ne.s32.totalorder %s33, %s49
      %p51 = scmp.eq.s32.totalorder %s25, 0
      %p52 = por %p50, %p51
      %s54 = sadd.s32 %s53, 1
      %p57 = scmp.eq.s32.totalorder %s19, 1
      %p58 = scmp.ne.s32.totalorder %s53, %s55
      %p59 = scmp.eq.s32.totalorder %s19, 0
      %p60 = por %p58, %p59
      %p61 = scmp.ne.s32.totalorder %s53, %s55
      %p62 = scmp.eq.s32.totalorder %s24, 1
      %p63 = por %p61, %p62
      %p64 = scmp.ne.s32.totalorder %s55, %s56
      %p65 = scmp.eq.s32.totalorder %s24, 0
      %p66 = por %p64, %p65
      %p67 = scmp.ne.s32.totalorder %s55, %s56
      %p68 = scmp.eq.s32.totalorder %s25, 1
      %p69 = por %p67, %p68
      %p71 = scmp.ne.s32.totalorder %s56, %s70
      %p72 = scmp.eq.s32.totalorder %s25, 0
      %p73 = por %p71, %p72
      %s75 = sadd.s32 %s74, 1
      %p78 = scmp.eq.s32.totalorder %s19, 1
      %p79 = scmp.ne.s32.totalorder %s74, %s76
      %p80 = scmp.eq.s32.totalorder %s19, 0
      %p81 = por %p79, %p80
      %p82 = scmp.ne.s32.totalorder %s74, %s76
      %p83 = scmp.eq.s32.totalorder %s24, 1
      %p84 = por %p82, %p83
      %p85 = scmp.ne.s32.totalorder %s76, %s77
      %p86 = scmp.eq.s32.totalorder %s24, 0
      %p87 = por %p85, %p86
      %p88 = scmp.ne.s32.totalorder %s76, %s77
      %p89 = scmp.eq.s32.totalorder %s25, 1
      %p90 = por %p88, %p89
      %p92 = scmp.ne.s32.totalorder %s77, %s91
      %p93 = scmp.eq.s32.totalorder %s25, 0
      %p94 = por %p92, %p93
      %s96 = sadd.s32 %s95, 1
      %p99 = scmp.eq.s32.totalorder %s19, 1
      %p100 = scmp.ne.s32.totalorder %s95, %s97
      %p101 = scmp.eq.s32.totalorder %s19, 0
      %p102 = por %p100, %p101
      %p103 = scmp.ne.s32.totalorder %s95, %s97
      %p104 = scmp.eq.s32.totalorder %s24, 1
      %p105 = por %p103, %p104
      %p106 = scmp.ne.s32.totalorder %s97, %s98
      %p107 = scmp.eq.s32.totalorder %s24, 0
      %p108 = por %p106, %p107
      %p109 = scmp.ne.s32.totalorder %s97, %s98
      %p110 = scmp.eq.s32.totalorder %s25, 1
      %p111 = por %p109, %p110
      %p113 = scmp.ne.s32.totalorder %s98, %s112
      %p114 = scmp.eq.s32.totalorder %s25, 0
      %p115 = por %p113, %p114
      %s117 = sadd.s32 %s116, 1
      %p120 = scmp.eq.s32.totalorder %s19, 1
      %p121 = scmp.ne.s32.totalorder %s116, %s118
      %p122 = scmp.eq.s32.totalorder %s19, 0
      %p123 = por %p121, %p122
      %p124 = scmp.ne.s32.totalorder %s116, %s118
      %p125 = scmp.eq.s32.totalorder %s24, 1
      %p126 = por %p124, %p125
      %p127 = scmp.ne.s32.totalorder %s118, %s119
      %p128 = scmp.eq.s32.totalorder %s24, 0
      %p129 = por %p127, %p128
      %p130 = scmp.ne.s32.totalorder %s118, %s119
      %p131 = scmp.eq.s32.totalorder %s25, 1
      %p132 = por %p130, %p131
      %p134 = scmp.ne.s32.totalorder %s119, %s133
      %p135 = scmp.eq.s32.totalorder %s25, 0
      %p136 = por %p134, %p135
      %s138 = sadd.s32 %s137, 1
      %p141 = scmp.eq.s32.totalorder %s19, 1
      %p142 = scmp.ne.s32.totalorder %s137, %s139
      %p143 = scmp.eq.s32.totalorder %s19, 0
      %p144 = por %p142, %p143
      %p145 = scmp.ne.s32.totalorder %s137, %s139
      %p146 = scmp.eq.s32.totalorder %s24, 1
      %p147 = por %p145, %p146
      %p148 = scmp.ne.s32.totalorder %s139, %s140
      %p149 = scmp.eq.s32.totalorder %s24, 0
      %p150 = por %p148, %p149
      %p151 = scmp.ne.s32.totalorder %s139, %s140
      %p152 = scmp.eq.s32.totalorder %s25, 1
      %p153 = por %p151, %p152
      %p155 = scmp.ne.s32.totalorder %s140, %s154
      %p156 = scmp.eq.s32.totalorder %s25, 0
      %p157 = por %p155, %p156
      %s159 = sadd.s32 %s158, 1
      %p162 = scmp.eq.s32.totalorder %s19, 1
      %p163 = scmp.ne.s32.totalorder %s158, %s160
      %p164 = scmp.eq.s32.totalorder %s19, 0
      %p165 = por %p163, %p164
      %p166 = scmp.ne.s32.totalorder %s158, %s160
      %p167 = scmp.eq.s32.totalorder %s24, 1
      %p168 = por %p166, %p167
      %p169 = scmp.ne.s32.totalorder %s160, %s161
      %p170 = scmp.eq.s32.totalorder %s24, 0
      %p171 = por %p169, %p170
      %p172 = scmp.ne.s32.totalorder %s160, %s161
      %p173 = scmp.eq.s32.totalorder %s25, 1
      %p174 = por %p172, %p173
      %p176 = scmp.ne.s32.totalorder %s161, %s175
      %p177 = scmp.eq.s32.totalorder %s25, 0
      %p178 = por %p176, %p177
      %s180 = sadd.s32 %s179, 1
      %p183 = scmp.eq.s32.totalorder %s19, 1
      %p184 = scmp.ne.s32.totalorder %s179, %s181
      %p185 = scmp.eq.s32.totalorder %s19, 0
      %p186 = por %p184, %p185
      %p187 = scmp.ne.s32.totalorder %s179, %s181
      %p188 = scmp.eq.s32.totalorder %s24, 1
      %p189 = por %p187, %p188
      %p190 = scmp.ne.s32.totalorder %s181, %s182
      %p191 = scmp.eq.s32.totalorder %s24, 0
      %p192 = por %p190, %p191
      %p193 = scmp.ne.s32.totalorder %s181, %s182
      %p194 = scmp.eq.s32.totalorder %s25, 1
      %p195 = por %p193, %p194
      %p197 = scmp.ne.s32.totalorder %s182, %s196
      %p198 = scmp.eq.s32.totalorder %s25, 0
      %p199 = por %p197, %p198
      %s200 = ssub.s32 %s19, %s26
      %p201 = scmp.eq.s32.totalorder %s200, 0
      %s203 = sadd.s32 %s202, 1
      %s204 = scalar_select %p201, %s202, %s203
      %p207 = pneg %p201
      %p208 = scmp.eq.s32.totalorder %s19, 1
      %p209 = por %p207, %p208
      %p210 = scmp.ne.s32.totalorder %s202, %s205
      %p211 = scmp.eq.s32.totalorder %s19, 0
      %p212 = por %p210, %p211
      %p213 = scmp.ne.s32.totalorder %s202, %s205
      %p214 = scmp.eq.s32.totalorder %s24, 1
      %p215 = por %p213, %p214
      %p216 = scmp.ne.s32.totalorder %s205, %s206
      %p217 = scmp.eq.s32.totalorder %s24, 0
      %p218 = por %p216, %p217
      %p219 = scmp.ne.s32.totalorder %s205, %s206
      %p220 = scmp.eq.s32.totalorder %s25, 1
      %p221 = por %p219, %p220
      %p223 = scmp.ne.s32.totalorder %s206, %s222
      %p224 = scmp.eq.s32.totalorder %s25, 0
      %p225 = por %p223, %p224
      %p226 = scmp.le.s32.totalorder 1, %s19
      %p227 = scmp.lt.s32.totalorder %s19, 3
      %p228 = pnand %p226, %p227
      %p229 = pneg %p228
      // Predicated region
      $region9: #{tpu_custom_call.1} parent=5 // pred_check
        _
      $region10: #{tpu_custom_call.1} parent=5 // pred_check_branch
        %231 = sbr.rel (%p228) target = $region12
      $region11: #{tpu_custom_call.1} parent=5 // pred_region
        %s232 = ssub.s32 %s19, 1
        // Predicated region
        $region13: #{tpu_custom_call.1} parent=11 // pred_check
          %p233 = pneg %p66
        $region14: #{tpu_custom_call.1} parent=11 // pred_check_branch
          %235 = sbr.rel (%p233) target = $region16
        $region15: #{tpu_custom_call.1} parent=11 // pred_region
          _
        $region16: #{tpu_custom_call.1} parent=11 // pred_fallthru
          _
        // Predicated region
        $region17: #{tpu_custom_call.1} parent=11 // pred_check
          %p236 = pneg %p87
        $region18: #{tpu_custom_call.1} parent=11 // pred_check_branch
          %238 = sbr.rel (%p236) target = $region20
        $region19: #{tpu_custom_call.1} parent=11 // pred_region
          %s240 = ssub.s32 128, 128
          %241 = vsyncadd [#allocation3], %s240
          %s243 = sshll.u32 [#allocation2], 4
          %s244 = int_to_ptr.vmem [resolvable:$true] %s243
          %246 = dma.hbm_to_vmem [thread:$0]  %s2, 128, %s244, [#allocation3]
        $region20: #{tpu_custom_call.1} parent=11 // pred_fallthru
          _
        // Predicated region
        $region21: #{tpu_custom_call.1} parent=11 // pred_check
          %p247 = pneg %p108
        $region22: #{tpu_custom_call.1} parent=11 // pred_check_branch
          %249 = sbr.rel (%p247) target = $region24
        $region23: #{tpu_custom_call.1} parent=11 // pred_region
          %s251 = ssub.s32 512, 512
          %252 = vsyncadd [#allocation6], %s251
          %s253 = sshll.u32 [#allocation5], 4
          %s254 = int_to_ptr.vmem [resolvable:$true] %s253
          %259 = dma.hbm_to_vmem [thread:$0]  %s3, 512, %s254, [#allocation6], 128, 128, 8
        $region24: #{tpu_custom_call.1} parent=11 // pred_fallthru
          _
        // Predicated region
        $region25: #{tpu_custom_call.1} parent=11 // pred_check
          %p260 = pneg %p129
        $region26: #{tpu_custom_call.1} parent=11 // pred_check_branch
          %262 = sbr.rel (%p260) target = $region28
        $region27: #{tpu_custom_call.1} parent=11 // pred_region
          %s264 = ssub.s32 512, 512
          %265 = vsyncadd [#allocation6], %s264
          %s266 = sshll.u32 [#allocation7], 4
          %s267 = int_to_ptr.vmem [resolvable:$true] %s266
          %272 = dma.hbm_to_vmem [thread:$0]  %s4, 512, %s267, [#allocation6], 128, 128, 8
        $region28: #{tpu_custom_call.1} parent=11 // pred_fallthru
          _
        // Predicated region
        $region29: #{tpu_custom_call.1} parent=11 // pred_check
          %p273 = pneg %p150
        $region30: #{tpu_custom_call.1} parent=11 // pred_check_branch
          %275 = sbr.rel (%p273) target = $region32
        $region31: #{tpu_custom_call.1} parent=11 // pred_region
          _
        $region32: #{tpu_custom_call.1} parent=11 // pred_fallthru
          _
        // Predicated region
        $region33: #{tpu_custom_call.1} parent=11 // pred_check
          %p276 = pneg %p171
        $region34: #{tpu_custom_call.1} parent=11 // pred_check_branch
          %278 = sbr.rel (%p276) target = $region36
        $region35: #{tpu_custom_call.1} parent=11 // pred_region
          _
        $region36: #{tpu_custom_call.1} parent=11 // pred_fallthru
          _
        // Predicated region
        $region37: #{tpu_custom_call.1} parent=11 // pred_check
          %p279 = pneg %p192
        $region38: #{tpu_custom_call.1} parent=11 // pred_check_branch
          %281 = sbr.rel (%p279) target = $region40
        $region39: #{tpu_custom_call.1} parent=11 // pred_region
          _
        $region40: #{tpu_custom_call.1} parent=11 // pred_fallthru
          _
      $region12: #{tpu_custom_call.1} parent=5 // pred_fallthru
        _
      %p282 = scmp.lt.s32.totalorder %s19, 2
      // Predicated region
      $region41: #{tpu_custom_call.1} parent=5 // pred_check
        %p283 = pneg %p282
      $region42: #{tpu_custom_call.1} parent=5 // pred_check_branch
        %285 = sbr.rel (%p283) target = $region44
      $region43: #{tpu_custom_call.1} parent=5 // pred_region
        // Predicated region
        $region45: #{tpu_custom_call.1} parent=43 // pred_check
          %p286 = pneg %p39
        $region46: #{tpu_custom_call.1} parent=43 // pred_check_branch
          %288 = sbr.rel (%p286) target = $region48
        $region47: #{tpu_custom_call.1} parent=43 // pred_region
          %p289 = scmp.lt.s32.totalorder %s19, 1
          %s290 = scalar_select %p289, %s19, 1
          %s291 = smul.addr %s290, 8
          %s292 = scalar_lea.vmem %s0, %s291
        $region48: #{tpu_custom_call.1} parent=43 // pred_fallthru
          _
      $region44: #{tpu_custom_call.1} parent=5 // pred_fallthru
        _
      %p293 = scmp.le.s32.totalorder 1, %s19
      %p294 = scmp.lt.s32.totalorder %s19, 3
      %p295 = pnand %p293, %p294
      %p296 = pneg %p295
      // Predicated region
      $region49: #{tpu_custom_call.1} parent=5 // pred_check
        _
      $region50: #{tpu_custom_call.1} parent=5 // pred_check_branch
        %298 = sbr.rel (%p295) target = $region52
      $region51: #{tpu_custom_call.1} parent=5 // pred_region
        %s299 = ssub.s32 %s19, 1
        // Predicated region
        $region53: #{tpu_custom_call.1} parent=51 // pred_check
          %p300 = pneg %p87
        $region54: #{tpu_custom_call.1} parent=51 // pred_check_branch
          %302 = sbr.rel (%p300) target = $region56
        $region55: #{tpu_custom_call.1} parent=51 // pred_region
          %303 = dma.done [#allocation3], 128
        $region56: #{tpu_custom_call.1} parent=51 // pred_fallthru
          _
        // Predicated region
        $region57: #{tpu_custom_call.1} parent=51 // pred_check
          %p304 = pneg %p108
        $region58: #{tpu_custom_call.1} parent=51 // pred_check_branch
          %306 = sbr.rel (%p304) target = $region60
        $region59: #{tpu_custom_call.1} parent=51 // pred_region
          %307 = dma.done [#allocation6], 512
        $region60: #{tpu_custom_call.1} parent=51 // pred_fallthru
          _
        // Predicated region
        $region61: #{tpu_custom_call.1} parent=51 // pred_check
          %p308 = pneg %p129
        $region62: #{tpu_custom_call.1} parent=51 // pred_check_branch
          %310 = sbr.rel (%p308) target = $region64
        $region63: #{tpu_custom_call.1} parent=51 // pred_region
          %311 = dma.done [#allocation6], 512
        $region64: #{tpu_custom_call.1} parent=51 // pred_fallthru
          _
        %p312 = scmp.lt.s32.totalorder %s24, 1
        %s313 = scalar_select %p312, %s24, 1
        %s314 = smul.addr %s313, 8
        %s315 = scalar_lea.vmem %s0, %s314
        %p316 = pneg %p45
        %p317 = pneg %p42
        %p318 = pneg %p66
        %p319 = pneg %p63
        %p320 = pneg %p87
        %p321 = pneg %p84
        %p322 = pneg %p108
        %p323 = pneg %p105
        %p324 = pneg %p129
        %p325 = pneg %p126
        %p326 = pneg %p150
        %p327 = pneg %p147
        %p328 = pneg %p171
        %p329 = pneg %p168
        %p330 = pneg %p192
        %p331 = pneg %p189
        %p332 = pneg %p218
        %p333 = pneg %p215
        %s334 = sand.u32 %s205, 1
        %s335 = scalar_lea.sflag [#allocation4], %s334
        %s336 = sand.u32 %s205, 1
        %s337 = smul.addr %s336, 8
        %s338 = scalar_lea.vmem [#allocation8], %s337
        %p339 = scmp.lt.s32.totalorder %s24, 1
        %s340 = scalar_select %p339, %s24, 1
        %s341 = smul.addr %s340, 8
        %s342 = scalar_lea.vmem %s0, %s341
        %v343 = vld [vmem:[%s342] sm:$0xff]
        %v344 = vld [vmem:[%s7] sm:$0xff]
        %s345 = scalar_lea.vmem %s7, 8
        %v346 = vld [vmem:[%s345] sm:$0xff]
        %s347 = scalar_lea.vmem %s7, 16
        %v348 = vld [vmem:[%s347] sm:$0xff]
        %s349 = scalar_lea.vmem %s7, 24
        %v350 = vld [vmem:[%s349] sm:$0xff]
        %s351 = scalar_lea.vmem %s7, 32
        %v352 = vld [vmem:[%s351] sm:$0xff]
        %s353 = scalar_lea.vmem %s7, 40
        %v354 = vld [vmem:[%s353] sm:$0xff]
        %vm355 = vcmask 261120
        %v356 = vsel %vm355, %v343, 0.0
        %357 = vadd.xlane.f32.xlu0 %v356
        %v358 = vpop.xlane.xlu0 %357
        %v359 = vrcp.pop 32.0
        %v360 = vmul.f32 %v358, %v359
        %v361 = vsub.f32 %v343, %v360
        %v362 = vmul.f32 %v361, %v361
        %v363 = vsel %vm355, %v362, 0.0
        %364 = vadd.xlane.f32.xlu0 %v363
        %v365 = vpop.xlane.xlu0 %364
        %v366 = vmul.f32 %v365, %v359
        %v367 = vadd.f32 %v366, 1e-05
        %v368 = vrsqrt.pop %v367
        %v369 = vmul.f32 %v361, %v368
        %v370 = vmul.f32 %v369, %v344
        %v371 = vadd.f32 %v370, %v346
        %v372 = vld [vmem:[%s1] sm:$0xff]
        %v373 = vld [vmem:[%s1 + $0x8] sm:$0xff]
        %v374 = vld [vmem:[%s1 + $0x10] sm:$0xff]
        %v375 = vld [vmem:[%s1 + $0x18] sm:$0xff]
        %v376 = vld [vmem:[#allocation2] sm:$0xff]
        %v378 = vsel %vm355, %v371, 0
        %380 = vmatprep.subr.mxu0 0.0
        %381 = vmatpush1.msra.mxu0 %v372
        %382 = vmatprep.subr.mxu0 0.0
        %383 = vmatpush1.msra.mxu0 %v373
        %384 = vmatprep.subr.mxu0 0.0
        %385 = vmatpush1.msra.mxu0 %v374
        %386 = vmatprep.subr.mxu0 0.0
        %387 = vmatpush1.msra.mxu0 %v375
        %388 = vmatprep.subr.mxu0 0.0
        %389 = vmatpush1.msra.mxu0 0.0
        %390 = vmatprep.subr.mxu0 0.0
        %391 = vmatpush1.msra.mxu0 0.0
        %392 = vmatprep.subr.mxu0 0.0
        %393 = vmatpush1.msra.mxu0 0.0
        %394 = vmatprep.subr.mxu0 0.0
        %395 = vmatpush1.msra.mxu0 0.0
        %396 = vmatprep.subr.mxu0 0.0
        %397 = vmatpush1.msra.mxu0 0.0
        %398 = vmatprep.subr.mxu0 0.0
        %399 = vmatpush1.msra.mxu0 0.0
        %400 = vmatprep.subr.mxu0 0.0
        %401 = vmatpush1.msra.mxu0 0.0
        %402 = vmatprep.subr.mxu0 0.0
        %403 = vmatpush1.msra.mxu0 0.0
        %404 = vmatprep.subr.mxu0 0.0
        %405 = vmatpush1.msra.mxu0 0.0
        %406 = vmatprep.subr.mxu0 0.0
        %407 = vmatpush1.msra.mxu0 0.0
        %408 = vmatprep.subr.mxu0 0.0
        %409 = vmatpush1.msra.mxu0 0.0
        %410 = vmatprep.subr.mxu0 0.0
        %411 = vmatpush1.msra.mxu0 0.0
        %412 = vmatprep.subr.mxu0 0.0
        %413 = vmatpush1.msra.mxu0 0.0
        %414 = vmatprep.subr.mxu0 0.0
        %415 = vmatpush1.msra.mxu0 0.0
        %416 = vmatprep.subr.mxu0 0.0
        %417 = vmatpush1.msra.mxu0 0.0
        %418 = vmatprep.subr.mxu0 0.0
        %419 = vmatpush1.msra.mxu0 0.0
        %420 = vmatprep.subr.mxu0 0.0
        %421 = vmatpush1.msra.mxu0 0.0
        %422 = vmatprep.subr.mxu0 0.0
        %423 = vmatpush1.msra.mxu0 0.0
        %424 = vmatprep.subr.mxu0 0.0
        %425 = vmatpush1.msra.mxu0 0.0
        %426 = vmatprep.subr.mxu0 0.0
        %427 = vmatpush1.msra.mxu0 0.0
        %428 = vmatprep.subr.mxu0 0.0
        %429 = vmatpush1.msra.mxu0 0.0
        %430 = vmatprep.subr.mxu0 0.0
        %431 = vmatpush1.msra.mxu0 0.0
        %432 = vmatprep.subr.mxu0 0.0
        %433 = vmatpush1.msra.mxu0 0.0
        %434 = vmatprep.subr.mxu0 0.0
        %435 = vmatpush1.msra.mxu0 0.0
        %436 = vmatprep.subr.mxu0 0.0
        %437 = vmatpush1.msra.mxu0 0.0
        %438 = vmatprep.subr.mxu0 0.0
        %439 = vmatpush1.msra.mxu0 0.0
        %440 = vmatprep.subr.mxu0 0.0
        %441 = vmatpush1.msra.mxu0 0.0
        %442 = vmatprep.subr.mxu0 0.0
        %443 = vmatpush1.msra.mxu0 0.0
        %444 = vmatprep.mubr.f32.mxu0 0.0
        %445 = vmatmul.mubr.f32.gmra.mrb[0].mxu0 %v378
        %v446 = vpop.f32.mrb[0].mxu0
        %v447 = vadd.f32 %v376, %v446
        %v448 = vpop.f32.mrb[0].mxu0
        %449 = vdwg.mxu0
        %451 = vrot.lane.b32.xlu0 %v447, 96
        %v452 = vpop.permute.xlu0 %451
        %vm453 = vcmask 64512
        %v454 = vsel %vm453, %v447, 0
        %v456 = vsel %vm453, %v452, 0
        %458 = vmatprep.subr.mxu0 0.0
        %459 = vmatpush1.xpose.msra.mxu0 %v456
        %460 = vmatprep.subr.mxu0 0.0
        %461 = vmatpush1.xpose.msra.mxu0 0.0
        %462 = vmatprep.subr.mxu0 0.0
        %463 = vmatpush1.xpose.msra.mxu0 0.0
        %464 = vmatprep.subr.mxu0 0.0
        %465 = vmatpush1.xpose.msra.mxu0 0.0
        %466 = vmatprep.subr.mxu0 0.0
        %467 = vmatpush1.xpose.msra.mxu0 0.0
        %468 = vmatprep.subr.mxu0 0.0
        %469 = vmatpush1.xpose.msra.mxu0 0.0
        %470 = vmatprep.subr.mxu0 0.0
        %471 = vmatpush1.xpose.msra.mxu0 0.0
        %472 = vmatprep.subr.mxu0 0.0
        %473 = vmatpush1.xpose.msra.mxu0 0.0
        %474 = vmatprep.subr.mxu0 0.0
        %475 = vmatpush1.xpose.msra.mxu0 0.0
        %476 = vmatprep.subr.mxu0 0.0
        %477 = vmatpush1.xpose.msra.mxu0 0.0
        %478 = vmatprep.subr.mxu0 0.0
        %479 = vmatpush1.xpose.msra.mxu0 0.0
        %480 = vmatprep.subr.mxu0 0.0
        %481 = vmatpush1.xpose.msra.mxu0 0.0
        %482 = vmatprep.subr.mxu0 0.0
        %483 = vmatpush1.xpose.msra.mxu0 0.0
        %484 = vmatprep.subr.mxu0 0.0
        %485 = vmatpush1.xpose.msra.mxu0 0.0
        %486 = vmatprep.subr.mxu0 0.0
        %487 = vmatpush1.xpose.msra.mxu0 0.0
        %488 = vmatprep.subr.mxu0 0.0
        %489 = vmatpush1.xpose.msra.mxu0 0.0
        %490 = vmatprep.subr.mxu0 0.0
        %491 = vmatpush1.xpose.msra.mxu0 0.0
        %492 = vmatprep.subr.mxu0 0.0
        %493 = vmatpush1.xpose.msra.mxu0 0.0
        %494 = vmatprep.subr.mxu0 0.0
        %495 = vmatpush1.xpose.msra.mxu0 0.0
        %496 = vmatprep.subr.mxu0 0.0
        %497 = vmatpush1.xpose.msra.mxu0 0.0
        %498 = vmatprep.subr.mxu0 0.0
        %499 = vmatpush1.xpose.msra.mxu0 0.0
        %500 = vmatprep.subr.mxu0 0.0
        %501 = vmatpush1.xpose.msra.mxu0 0.0
        %502 = vmatprep.subr.mxu0 0.0
        %503 = vmatpush1.xpose.msra.mxu0 0.0
        %504 = vmatprep.subr.mxu0 0.0
        %505 = vmatpush1.xpose.msra.mxu0 0.0
        %506 = vmatprep.subr.mxu0 0.0
        %507 = vmatpush1.xpose.msra.mxu0 0.0
        %508 = vmatprep.subr.mxu0 0.0
        %509 = vmatpush1.xpose.msra.mxu0 0.0
        %510 = vmatprep.subr.mxu0 0.0
        %511 = vmatpush1.xpose.msra.mxu0 0.0
        %512 = vmatprep.subr.mxu0 0.0
        %513 = vmatpush1.xpose.msra.mxu0 0.0
        %514 = vmatprep.subr.mxu0 0.0
        %515 = vmatpush1.xpose.msra.mxu0 0.0
        %516 = vmatprep.subr.mxu0 0.0
        %517 = vmatpush1.xpose.msra.mxu0 0.0
        %518 = vmatprep.subr.mxu0 0.0
        %519 = vmatpush1.xpose.msra.mxu0 0.0
        %520 = vmatprep.subr.mxu0 0.0
        %521 = vmatpush1.xpose.msra.mxu0 0.0
        %522 = vmatprep.mubr.f32.mxu0 0.0
        %523 = vmatmul.mubr.f32.gmra.mrb[0].mxu0 %v454
        %v524 = vpop.f32.mrb[0].mxu0
        %v525 = vadd.f32 0.0, %v524
        %v526 = vpop.f32.mrb[0].mxu0
        %527 = vdwg.mxu0
        %v528 = vsel %vm453, %v525, -inf
        %529 = vmax.xlane.f32.xlu0 %v528
        %v530 = vpop.xlane.xlu0 %529
        %v531 = vsub.f32 %v525, %v530
        %v532 = vmul.f32 %v531, 1.442695
        %v533 = vpow.pop %v532
        %v534 = vsel %vm453, %v533, 0.0
        %535 = vadd.xlane.f32.xlu0 %v534
        %v536 = vpop.xlane.xlu0 %535
        %v537 = vrcp.pop %v536
        %v538 = vmul.f32 %v533, %v537
        %539 = vrot.lane.b32.xlu0 %v447, 64
        %v540 = vpop.permute.xlu0 %539
        %v543 = vsel %vm453, %v538, 0
        %545 = vmatprep.subr.mxu0 0.0
        %546 = vmatpush1.msra.mxu0 %v540
        %547 = vmatprep.subr.mxu0 0.0
        %548 = vmatpush1.msra.mxu0 0.0
        %549 = vmatprep.subr.mxu0 0.0
        %550 = vmatpush1.msra.mxu0 0.0
        %551 = vmatprep.subr.mxu0 0.0
        %552 = vmatpush1.msra.mxu0 0.0
        %553 = vmatprep.subr.mxu0 0.0
        %554 = vmatpush1.msra.mxu0 0.0
        %555 = vmatprep.subr.mxu0 0.0
        %556 = vmatpush1.msra.mxu0 0.0
        %557 = vmatprep.subr.mxu0 0.0
        %558 = vmatpush1.msra.mxu0 0.0
        %559 = vmatprep.subr.mxu0 0.0
        %560 = vmatpush1.msra.mxu0 0.0
        %561 = vmatprep.subr.mxu0 0.0
        %562 = vmatpush1.msra.mxu0 0.0
        %563 = vmatprep.subr.mxu0 0.0
        %564 = vmatpush1.msra.mxu0 0.0
        %565 = vmatprep.subr.mxu0 0.0
        %566 = vmatpush1.msra.mxu0 0.0
        %567 = vmatprep.subr.mxu0 0.0
        %568 = vmatpush1.msra.mxu0 0.0
        %569 = vmatprep.subr.mxu0 0.0
        %570 = vmatpush1.msra.mxu0 0.0
        %571 = vmatprep.subr.mxu0 0.0
        %572 = vmatpush1.msra.mxu0 0.0
        %573 = vmatprep.subr.mxu0 0.0
        %574 = vmatpush1.msra.mxu0 0.0
        %575 = vmatprep.subr.mxu0 0.0
        %576 = vmatpush1.msra.mxu0 0.0
        %577 = vmatprep.subr.mxu0 0.0
        %578 = vmatpush1.msra.mxu0 0.0
        %579 = vmatprep.subr.mxu0 0.0
        %580 = vmatpush1.msra.mxu0 0.0
        %581 = vmatprep.subr.mxu0 0.0
        %582 = vmatpush1.msra.mxu0 0.0
        %583 = vmatprep.subr.mxu0 0.0
        %584 = vmatpush1.msra.mxu0 0.0
        %585 = vmatprep.subr.mxu0 0.0
        %586 = vmatpush1.msra.mxu0 0.0
        %587 = vmatprep.subr.mxu0 0.0
        %588 = vmatpush1.msra.mxu0 0.0
        %589 = vmatprep.subr.mxu0 0.0
        %590 = vmatpush1.msra.mxu0 0.0
        %591 = vmatprep.subr.mxu0 0.0
        %592 = vmatpush1.msra.mxu0 0.0
        %593 = vmatprep.subr.mxu0 0.0
        %594 = vmatpush1.msra.mxu0 0.0
        %595 = vmatprep.subr.mxu0 0.0
        %596 = vmatpush1.msra.mxu0 0.0
        %597 = vmatprep.subr.mxu0 0.0
        %598 = vmatpush1.msra.mxu0 0.0
        %599 = vmatprep.subr.mxu0 0.0
        %600 = vmatpush1.msra.mxu0 0.0
        %601 = vmatprep.subr.mxu0 0.0
        %602 = vmatpush1.msra.mxu0 0.0
        %603 = vmatprep.subr.mxu0 0.0
        %604 = vmatpush1.msra.mxu0 0.0
        %605 = vmatprep.subr.mxu0 0.0
        %606 = vmatpush1.msra.mxu0 0.0
        %607 = vmatprep.subr.mxu0 0.0
        %608 = vmatpush1.msra.mxu0 0.0
        %609 = vmatprep.mubr.f32.mxu0 0.0
        %610 = vmatmul.mubr.f32.gmra.mrb[0].mxu0 %v543
        %v611 = vpop.f32.mrb[0].mxu0
        %v612 = vadd.f32 0.0, %v611
        %v613 = vpop.f32.mrb[0].mxu0
        %614 = vdwg.mxu0
        %615 = vrot.lane.b32.xlu0 %v447, 120
        %v616 = vpop.permute.xlu0 %615
        %617 = vrot.lane.b32.xlu0 %v447, 88
        %v618 = vpop.permute.xlu0 %617
        %v619 = vsel %vm453, %v616, 0
        %v621 = vsel %vm453, %v618, 0
        %623 = vmatprep.subr.mxu0 0.0
        %624 = vmatpush1.xpose.msra.mxu0 %v621
        %625 = vmatprep.subr.mxu0 0.0
        %626 = vmatpush1.xpose.msra.mxu0 0.0
        %627 = vmatprep.subr.mxu0 0.0
        %628 = vmatpush1.xpose.msra.mxu0 0.0
        %629 = vmatprep.subr.mxu0 0.0
        %630 = vmatpush1.xpose.msra.mxu0 0.0
        %631 = vmatprep.subr.mxu0 0.0
        %632 = vmatpush1.xpose.msra.mxu0 0.0
        %633 = vmatprep.subr.mxu0 0.0
        %634 = vmatpush1.xpose.msra.mxu0 0.0
        %635 = vmatprep.subr.mxu0 0.0
        %636 = vmatpush1.xpose.msra.mxu0 0.0
        %637 = vmatprep.subr.mxu0 0.0
        %638 = vmatpush1.xpose.msra.mxu0 0.0
        %639 = vmatprep.subr.mxu0 0.0
        %640 = vmatpush1.xpose.msra.mxu0 0.0
        %641 = vmatprep.subr.mxu0 0.0
        %642 = vmatpush1.xpose.msra.mxu0 0.0
        %643 = vmatprep.subr.mxu0 0.0
        %644 = vmatpush1.xpose.msra.mxu0 0.0
        %645 = vmatprep.subr.mxu0 0.0
        %646 = vmatpush1.xpose.msra.mxu0 0.0
        %647 = vmatprep.subr.mxu0 0.0
        %648 = vmatpush1.xpose.msra.mxu0 0.0
        %649 = vmatprep.subr.mxu0 0.0
        %650 = vmatpush1.xpose.msra.mxu0 0.0
        %651 = vmatprep.subr.mxu0 0.0
        %652 = vmatpush1.xpose.msra.mxu0 0.0
        %653 = vmatprep.subr.mxu0 0.0
        %654 = vmatpush1.xpose.msra.mxu0 0.0
        %655 = vmatprep.subr.mxu0 0.0
        %656 = vmatpush1.xpose.msra.mxu0 0.0
        %657 = vmatprep.subr.mxu0 0.0
        %658 = vmatpush1.xpose.msra.mxu0 0.0
        %659 = vmatprep.subr.mxu0 0.0
        %660 = vmatpush1.xpose.msra.mxu0 0.0
        %661 = vmatprep.subr.mxu0 0.0
        %662 = vmatpush1.xpose.msra.mxu0 0.0
        %663 = vmatprep.subr.mxu0 0.0
        %664 = vmatpush1.xpose.msra.mxu0 0.0
        %665 = vmatprep.subr.mxu0 0.0
        %666 = vmatpush1.xpose.msra.mxu0 0.0
        %667 = vmatprep.subr.mxu0 0.0
        %668 = vmatpush1.xpose.msra.mxu0 0.0
        %669 = vmatprep.subr.mxu0 0.0
        %670 = vmatpush1.xpose.msra.mxu0 0.0
        %671 = vmatprep.subr.mxu0 0.0
        %672 = vmatpush1.xpose.msra.mxu0 0.0
        %673 = vmatprep.subr.mxu0 0.0
        %674 = vmatpush1.xpose.msra.mxu0 0.0
        %675 = vmatprep.subr.mxu0 0.0
        %676 = vmatpush1.xpose.msra.mxu0 0.0
        %677 = vmatprep.subr.mxu0 0.0
        %678 = vmatpush1.xpose.msra.mxu0 0.0
        %679 = vmatprep.subr.mxu0 0.0
        %680 = vmatpush1.xpose.msra.mxu0 0.0
        %681 = vmatprep.subr.mxu0 0.0
        %682 = vmatpush1.xpose.msra.mxu0 0.0
        %683 = vmatprep.subr.mxu0 0.0
        %684 = vmatpush1.xpose.msra.mxu0 0.0
        %685 = vmatprep.subr.mxu0 0.0
        %686 = vmatpush1.xpose.msra.mxu0 0.0
        %687 = vmatprep.mubr.f32.mxu0 0.0
        %688 = vmatmul.mubr.f32.gmra.mrb[0].mxu0 %v619
        %v689 = vpop.f32.mrb[0].mxu0
        %v690 = vadd.f32 0.0, %v689
        %v691 = vpop.f32.mrb[0].mxu0
        %692 = vdwg.mxu0
        %v693 = vsel %vm453, %v690, -inf
        %694 = vmax.xlane.f32.xlu0 %v693
        %v695 = vpop.xlane.xlu0 %694
        %v696 = vsub.f32 %v690, %v695
        %v697 = vmul.f32 %v696, 1.442695
        %v698 = vpow.pop %v697
        %v699 = vsel %vm453, %v698, 0.0
        %700 = vadd.xlane.f32.xlu0 %v699
        %v701 = vpop.xlane.xlu0 %700
        %v702 = vrcp.pop %v701
        %v703 = vmul.f32 %v698, %v702
        %704 = vrot.lane.b32.xlu0 %v447, 56
        %v705 = vpop.permute.xlu0 %704
        %v708 = vsel %vm453, %v703, 0
        %710 = vmatprep.subr.mxu0 0.0
        %711 = vmatpush1.msra.mxu0 %v705
        %712 = vmatprep.subr.mxu0 0.0
        %713 = vmatpush1.msra.mxu0 0.0
        %714 = vmatprep.subr.mxu0 0.0
        %715 = vmatpush1.msra.mxu0 0.0
        %716 = vmatprep.subr.mxu0 0.0
        %717 = vmatpush1.msra.mxu0 0.0
        %718 = vmatprep.subr.mxu0 0.0
        %719 = vmatpush1.msra.mxu0 0.0
        %720 = vmatprep.subr.mxu0 0.0
        %721 = vmatpush1.msra.mxu0 0.0
        %722 = vmatprep.subr.mxu0 0.0
        %723 = vmatpush1.msra.mxu0 0.0
        %724 = vmatprep.subr.mxu0 0.0
        %725 = vmatpush1.msra.mxu0 0.0
        %726 = vmatprep.subr.mxu0 0.0
        %727 = vmatpush1.msra.mxu0 0.0
        %728 = vmatprep.subr.mxu0 0.0
        %729 = vmatpush1.msra.mxu0 0.0
        %730 = vmatprep.subr.mxu0 0.0
        %731 = vmatpush1.msra.mxu0 0.0
        %732 = vmatprep.subr.mxu0 0.0
        %733 = vmatpush1.msra.mxu0 0.0
        %734 = vmatprep.subr.mxu0 0.0
        %735 = vmatpush1.msra.mxu0 0.0
        %736 = vmatprep.subr.mxu0 0.0
        %737 = vmatpush1.msra.mxu0 0.0
        %738 = vmatprep.subr.mxu0 0.0
        %739 = vmatpush1.msra.mxu0 0.0
        %740 = vmatprep.subr.mxu0 0.0
        %741 = vmatpush1.msra.mxu0 0.0
        %742 = vmatprep.subr.mxu0 0.0
        %743 = vmatpush1.msra.mxu0 0.0
        %744 = vmatprep.subr.mxu0 0.0
        %745 = vmatpush1.msra.mxu0 0.0
        %746 = vmatprep.subr.mxu0 0.0
        %747 = vmatpush1.msra.mxu0 0.0
        %748 = vmatprep.subr.mxu0 0.0
        %749 = vmatpush1.msra.mxu0 0.0
        %750 = vmatprep.subr.mxu0 0.0
        %751 = vmatpush1.msra.mxu0 0.0
        %752 = vmatprep.subr.mxu0 0.0
        %753 = vmatpush1.msra.mxu0 0.0
        %754 = vmatprep.subr.mxu0 0.0
        %755 = vmatpush1.msra.mxu0 0.0
        %756 = vmatprep.subr.mxu0 0.0
        %757 = vmatpush1.msra.mxu0 0.0
        %758 = vmatprep.subr.mxu0 0.0
        %759 = vmatpush1.msra.mxu0 0.0
        %760 = vmatprep.subr.mxu0 0.0
        %761 = vmatpush1.msra.mxu0 0.0
        %762 = vmatprep.subr.mxu0 0.0
        %763 = vmatpush1.msra.mxu0 0.0
        %764 = vmatprep.subr.mxu0 0.0
        %765 = vmatpush1.msra.mxu0 0.0
        %766 = vmatprep.subr.mxu0 0.0
        %767 = vmatpush1.msra.mxu0 0.0
        %768 = vmatprep.subr.mxu0 0.0
        %769 = vmatpush1.msra.mxu0 0.0
        %770 = vmatprep.subr.mxu0 0.0
        %771 = vmatpush1.msra.mxu0 0.0
        %772 = vmatprep.subr.mxu0 0.0
        %773 = vmatpush1.msra.mxu0 0.0
        %774 = vmatprep.mubr.f32.mxu0 0.0
        %775 = vmatmul.mubr.f32.gmra.mrb[0].mxu0 %v708
        %v776 = vpop.f32.mrb[0].mxu0
        %v777 = vadd.f32 0.0, %v776
        %v778 = vpop.f32.mrb[0].mxu0
        %779 = vdwg.mxu0
        %780 = vrot.lane.b32.xlu0 %v447, 112
        %v781 = vpop.permute.xlu0 %780
        %782 = vrot.lane.b32.xlu0 %v447, 80
        %v783 = vpop.permute.xlu0 %782
        %v784 = vsel %vm453, %v781, 0
        %v786 = vsel %vm453, %v783, 0
        %788 = vmatprep.subr.mxu0 0.0
        %789 = vmatpush1.xpose.msra.mxu0 %v786
        %790 = vmatprep.subr.mxu0 0.0
        %791 = vmatpush1.xpose.msra.mxu0 0.0
        %792 = vmatprep.subr.mxu0 0.0
        %793 = vmatpush1.xpose.msra.mxu0 0.0
        %794 = vmatprep.subr.mxu0 0.0
        %795 = vmatpush1.xpose.msra.mxu0 0.0
        %796 = vmatprep.subr.mxu0 0.0
        %797 = vmatpush1.xpose.msra.mxu0 0.0
        %798 = vmatprep.subr.mxu0 0.0
        %799 = vmatpush1.xpose.msra.mxu0 0.0
        %800 = vmatprep.subr.mxu0 0.0
        %801 = vmatpush1.xpose.msra.mxu0 0.0
        %802 = vmatprep.subr.mxu0 0.0
        %803 = vmatpush1.xpose.msra.mxu0 0.0
        %804 = vmatprep.subr.mxu0 0.0
        %805 = vmatpush1.xpose.msra.mxu0 0.0
        %806 = vmatprep.subr.mxu0 0.0
        %807 = vmatpush1.xpose.msra.mxu0 0.0
        %808 = vmatprep.subr.mxu0 0.0
        %809 = vmatpush1.xpose.msra.mxu0 0.0
        %810 = vmatprep.subr.mxu0 0.0
        %811 = vmatpush1.xpose.msra.mxu0 0.0
        %812 = vmatprep.subr.mxu0 0.0
        %813 = vmatpush1.xpose.msra.mxu0 0.0
        %814 = vmatprep.subr.mxu0 0.0
        %815 = vmatpush1.xpose.msra.mxu0 0.0
        %816 = vmatprep.subr.mxu0 0.0
        %817 = vmatpush1.xpose.msra.mxu0 0.0
        %818 = vmatprep.subr.mxu0 0.0
        %819 = vmatpush1.xpose.msra.mxu0 0.0
        %820 = vmatprep.subr.mxu0 0.0
        %821 = vmatpush1.xpose.msra.mxu0 0.0
        %822 = vmatprep.subr.mxu0 0.0
        %823 = vmatpush1.xpose.msra.mxu0 0.0
        %824 = vmatprep.subr.mxu0 0.0
        %825 = vmatpush1.xpose.msra.mxu0 0.0
        %826 = vmatprep.subr.mxu0 0.0
        %827 = vmatpush1.xpose.msra.mxu0 0.0
        %828 = vmatprep.subr.mxu0 0.0
        %829 = vmatpush1.xpose.msra.mxu0 0.0
        %830 = vmatprep.subr.mxu0 0.0
        %831 = vmatpush1.xpose.msra.mxu0 0.0
        %832 = vmatprep.subr.mxu0 0.0
        %833 = vmatpush1.xpose.msra.mxu0 0.0
        %834 = vmatprep.subr.mxu0 0.0
        %835 = vmatpush1.xpose.msra.mxu0 0.0
        %836 = vmatprep.subr.mxu0 0.0
        %837 = vmatpush1.xpose.msra.mxu0 0.0
        %838 = vmatprep.subr.mxu0 0.0
        %839 = vmatpush1.xpose.msra.mxu0 0.0
        %840 = vmatprep.subr.mxu0 0.0
        %841 = vmatpush1.xpose.msra.mxu0 0.0
        %842 = vmatprep.subr.mxu0 0.0
        %843 = vmatpush1.xpose.msra.mxu0 0.0
        %844 = vmatprep.subr.mxu0 0.0
        %845 = vmatpush1.xpose.msra.mxu0 0.0
        %846 = vmatprep.subr.mxu0 0.0
        %847 = vmatpush1.xpose.msra.mxu0 0.0
        %848 = vmatprep.subr.mxu0 0.0
        %849 = vmatpush1.xpose.msra.mxu0 0.0
        %850 = vmatprep.subr.mxu0 0.0
        %851 = vmatpush1.xpose.msra.mxu0 0.0
        %852 = vmatprep.mubr.f32.mxu0 0.0
        %853 = vmatmul.mubr.f32.gmra.mrb[0].mxu0 %v784
        %v854 = vpop.f32.mrb[0].mxu0
        %v855 = vadd.f32 0.0, %v854
        %v856 = vpop.f32.mrb[0].mxu0
        %857 = vdwg.mxu0
        %v858 = vsel %vm453, %v855, -inf
        %859 = vmax.xlane.f32.xlu0 %v858
        %v860 = vpop.xlane.xlu0 %859
        %v861 = vsub.f32 %v855, %v860
        %v862 = vmul.f32 %v861, 1.442695
        %v863 = vpow.pop %v862
        %v864 = vsel %vm453, %v863, 0.0
        %865 = vadd.xlane.f32.xlu0 %v864
        %v866 = vpop.xlane.xlu0 %865
        %v867 = vrcp.pop %v866
        %v868 = vmul.f32 %v863, %v867
        %869 = vrot.lane.b32.xlu0 %v447, 48
        %v870 = vpop.permute.xlu0 %869
        %v873 = vsel %vm453, %v868, 0
        %875 = vmatprep.subr.mxu0 0.0
        %876 = vmatpush1.msra.mxu0 %v870
        %877 = vmatprep.subr.mxu0 0.0
        %878 = vmatpush1.msra.mxu0 0.0
        %879 = vmatprep.subr.mxu0 0.0
        %880 = vmatpush1.msra.mxu0 0.0
        %881 = vmatprep.subr.mxu0 0.0
        %882 = vmatpush1.msra.mxu0 0.0
        %883 = vmatprep.subr.mxu0 0.0
        %884 = vmatpush1.msra.mxu0 0.0
        %885 = vmatprep.subr.mxu0 0.0
        %886 = vmatpush1.msra.mxu0 0.0
        %887 = vmatprep.subr.mxu0 0.0
        %888 = vmatpush1.msra.mxu0 0.0
        %889 = vmatprep.subr.mxu0 0.0
        %890 = vmatpush1.msra.mxu0 0.0
        %891 = vmatprep.subr.mxu0 0.0
        %892 = vmatpush1.msra.mxu0 0.0
        %893 = vmatprep.subr.mxu0 0.0
        %894 = vmatpush1.msra.mxu0 0.0
        %895 = vmatprep.subr.mxu0 0.0
        %896 = vmatpush1.msra.mxu0 0.0
        %897 = vmatprep.subr.mxu0 0.0
        %898 = vmatpush1.msra.mxu0 0.0
        %899 = vmatprep.subr.mxu0 0.0
        %900 = vmatpush1.msra.mxu0 0.0
        %901 = vmatprep.subr.mxu0 0.0
        %902 = vmatpush1.msra.mxu0 0.0
        %903 = vmatprep.subr.mxu0 0.0
        %904 = vmatpush1.msra.mxu0 0.0
        %905 = vmatprep.subr.mxu0 0.0
        %906 = vmatpush1.msra.mxu0 0.0
        %907 = vmatprep.subr.mxu0 0.0
        %908 = vmatpush1.msra.mxu0 0.0
        %909 = vmatprep.subr.mxu0 0.0
        %910 = vmatpush1.msra.mxu0 0.0
        %911 = vmatprep.subr.mxu0 0.0
        %912 = vmatpush1.msra.mxu0 0.0
        %913 = vmatprep.subr.mxu0 0.0
        %914 = vmatpush1.msra.mxu0 0.0
        %915 = vmatprep.subr.mxu0 0.0
        %916 = vmatpush1.msra.mxu0 0.0
        %917 = vmatprep.subr.mxu0 0.0
        %918 = vmatpush1.msra.mxu0 0.0
        %919 = vmatprep.subr.mxu0 0.0
        %920 = vmatpush1.msra.mxu0 0.0
        %921 = vmatprep.subr.mxu0 0.0
        %922 = vmatpush1.msra.mxu0 0.0
        %923 = vmatprep.subr.mxu0 0.0
        %924 = vmatpush1.msra.mxu0 0.0
        %925 = vmatprep.subr.mxu0 0.0
        %926 = vmatpush1.msra.mxu0 0.0
        %927 = vmatprep.subr.mxu0 0.0
        %928 = vmatpush1.msra.mxu0 0.0
        %929 = vmatprep.subr.mxu0 0.0
        %930 = vmatpush1.msra.mxu0 0.0
        %931 = vmatprep.subr.mxu0 0.0
        %932 = vmatpush1.msra.mxu0 0.0
        %933 = vmatprep.subr.mxu0 0.0
        %934 = vmatpush1.msra.mxu0 0.0
        %935 = vmatprep.subr.mxu0 0.0
        %936 = vmatpush1.msra.mxu0 0.0
        %937 = vmatprep.subr.mxu0 0.0
        %938 = vmatpush1.msra.mxu0 0.0
        %939 = vmatprep.mubr.f32.mxu0 0.0
        %940 = vmatmul.mubr.f32.gmra.mrb[0].mxu0 %v873
        %v941 = vpop.f32.mrb[0].mxu0
        %v942 = vadd.f32 0.0, %v941
        %v943 = vpop.f32.mrb[0].mxu0
        %944 = vdwg.mxu0
        %945 = vrot.lane.b32.xlu0 %v447, 104
        %v946 = vpop.permute.xlu0 %945
        %947 = vrot.lane.b32.xlu0 %v447, 72
        %v948 = vpop.permute.xlu0 %947
        %v949 = vsel %vm453, %v946, 0
        %v951 = vsel %vm453, %v948, 0
        %953 = vmatprep.subr.mxu0 0.0
        %954 = vmatpush1.xpose.msra.mxu0 %v951
        %955 = vmatprep.subr.mxu0 0.0
        %956 = vmatpush1.xpose.msra.mxu0 0.0
        %957 = vmatprep.subr.mxu0 0.0
        %958 = vmatpush1.xpose.msra.mxu0 0.0
        %959 = vmatprep.subr.mxu0 0.0
        %960 = vmatpush1.xpose.msra.mxu0 0.0
        %961 = vmatprep.subr.mxu0 0.0
        %962 = vmatpush1.xpose.msra.mxu0 0.0
        %963 = vmatprep.subr.mxu0 0.0
        %964 = vmatpush1.xpose.msra.mxu0 0.0
        %965 = vmatprep.subr.mxu0 0.0
        %966 = vmatpush1.xpose.msra.mxu0 0.0
        %967 = vmatprep.subr.mxu0 0.0
        %968 = vmatpush1.xpose.msra.mxu0 0.0
        %969 = vmatprep.subr.mxu0 0.0
        %970 = vmatpush1.xpose.msra.mxu0 0.0
        %971 = vmatprep.subr.mxu0 0.0
        %972 = vmatpush1.xpose.msra.mxu0 0.0
        %973 = vmatprep.subr.mxu0 0.0
        %974 = vmatpush1.xpose.msra.mxu0 0.0
        %975 = vmatprep.subr.mxu0 0.0
        %976 = vmatpush1.xpose.msra.mxu0 0.0
        %977 = vmatprep.subr.mxu0 0.0
        %978 = vmatpush1.xpose.msra.mxu0 0.0
        %979 = vmatprep.subr.mxu0 0.0
        %980 = vmatpush1.xpose.msra.mxu0 0.0
        %981 = vmatprep.subr.mxu0 0.0
        %982 = vmatpush1.xpose.msra.mxu0 0.0
        %983 = vmatprep.subr.mxu0 0.0
        %984 = vmatpush1.xpose.msra.mxu0 0.0
        %985 = vmatprep.subr.mxu0 0.0
        %986 = vmatpush1.xpose.msra.mxu0 0.0
        %987 = vmatprep.subr.mxu0 0.0
        %988 = vmatpush1.xpose.msra.mxu0 0.0
        %989 = vmatprep.subr.mxu0 0.0
        %990 = vmatpush1.xpose.msra.mxu0 0.0
        %991 = vmatprep.subr.mxu0 0.0
        %992 = vmatpush1.xpose.msra.mxu0 0.0
        %993 = vmatprep.subr.mxu0 0.0
        %994 = vmatpush1.xpose.msra.mxu0 0.0
        %995 = vmatprep.subr.mxu0 0.0
        %996 = vmatpush1.xpose.msra.mxu0 0.0
        %997 = vmatprep.subr.mxu0 0.0
        %998 = vmatpush1.xpose.msra.mxu0 0.0
        %999 = vmatprep.subr.mxu0 0.0
        %1000 = vmatpush1.xpose.msra.mxu0 0.0
        %1001 = vmatprep.subr.mxu0 0.0
        %1002 = vmatpush1.xpose.msra.mxu0 0.0
        %1003 = vmatprep.subr.mxu0 0.0
        %1004 = vmatpush1.xpose.msra.mxu0 0.0
        %1005 = vmatprep.subr.mxu0 0.0
        %1006 = vmatpush1.xpose.msra.mxu0 0.0
        %1007 = vmatprep.subr.mxu0 0.0
        %1008 = vmatpush1.xpose.msra.mxu0 0.0
        %1009 = vmatprep.subr.mxu0 0.0
        %1010 = vmatpush1.xpose.msra.mxu0 0.0
        %1011 = vmatprep.subr.mxu0 0.0
        %1012 = vmatpush1.xpose.msra.mxu0 0.0
        %1013 = vmatprep.subr.mxu0 0.0
        %1014 = vmatpush1.xpose.msra.mxu0 0.0
        %1015 = vmatprep.subr.mxu0 0.0
        %1016 = vmatpush1.xpose.msra.mxu0 0.0
        %1017 = vmatprep.mubr.f32.mxu0 0.0
        %1018 = vmatmul.mubr.f32.gmra.mrb[0].mxu0 %v949
        %v1019 = vpop.f32.mrb[0].mxu0
        %v1020 = vadd.f32 0.0, %v1019
        %v1021 = vpop.f32.mrb[0].mxu0
        %1022 = vdwg.mxu0
        %v1023 = vsel %vm453, %v1020, -inf
        %1024 = vmax.xlane.f32.xlu0 %v1023
        %v1025 = vpop.xlane.xlu0 %1024
        %v1026 = vsub.f32 %v1020, %v1025
        %v1027 = vmul.f32 %v1026, 1.442695
        %v1028 = vpow.pop %v1027
        %v1029 = vsel %vm453, %v1028, 0.0
        %1030 = vadd.xlane.f32.xlu0 %v1029
        %v1031 = vpop.xlane.xlu0 %1030
        %v1032 = vrcp.pop %v1031
        %v1033 = vmul.f32 %v1028, %v1032
        %1034 = vrot.lane.b32.xlu0 %v447, 40
        %v1035 = vpop.permute.xlu0 %1034
        %v1038 = vsel %vm453, %v1033, 0
        %1040 = vmatprep.subr.mxu0 0.0
        %1041 = vmatpush1.msra.mxu0 %v1035
        %1042 = vmatprep.subr.mxu0 0.0
        %1043 = vmatpush1.msra.mxu0 0.0
        %1044 = vmatprep.subr.mxu0 0.0
        %1045 = vmatpush1.msra.mxu0 0.0
        %1046 = vmatprep.subr.mxu0 0.0
        %1047 = vmatpush1.msra.mxu0 0.0
        %1048 = vmatprep.subr.mxu0 0.0
        %1049 = vmatpush1.msra.mxu0 0.0
        %1050 = vmatprep.subr.mxu0 0.0
        %1051 = vmatpush1.msra.mxu0 0.0
        %1052 = vmatprep.subr.mxu0 0.0
        %1053 = vmatpush1.msra.mxu0 0.0
        %1054 = vmatprep.subr.mxu0 0.0
        %1055 = vmatpush1.msra.mxu0 0.0
        %1056 = vmatprep.subr.mxu0 0.0
        %1057 = vmatpush1.msra.mxu0 0.0
        %1058 = vmatprep.subr.mxu0 0.0
        %1059 = vmatpush1.msra.mxu0 0.0
        %1060 = vmatprep.subr.mxu0 0.0
        %1061 = vmatpush1.msra.mxu0 0.0
        %1062 = vmatprep.subr.mxu0 0.0
        %1063 = vmatpush1.msra.mxu0 0.0
        %1064 = vmatprep.subr.mxu0 0.0
        %1065 = vmatpush1.msra.mxu0 0.0
        %1066 = vmatprep.subr.mxu0 0.0
        %1067 = vmatpush1.msra.mxu0 0.0
        %1068 = vmatprep.subr.mxu0 0.0
        %1069 = vmatpush1.msra.mxu0 0.0
        %1070 = vmatprep.subr.mxu0 0.0
        %1071 = vmatpush1.msra.mxu0 0.0
        %1072 = vmatprep.subr.mxu0 0.0
        %1073 = vmatpush1.msra.mxu0 0.0
        %1074 = vmatprep.subr.mxu0 0.0
        %1075 = vmatpush1.msra.mxu0 0.0
        %1076 = vmatprep.subr.mxu0 0.0
        %1077 = vmatpush1.msra.mxu0 0.0
        %1078 = vmatprep.subr.mxu0 0.0
        %1079 = vmatpush1.msra.mxu0 0.0
        %1080 = vmatprep.subr.mxu0 0.0
        %1081 = vmatpush1.msra.mxu0 0.0
        %1082 = vmatprep.subr.mxu0 0.0
        %1083 = vmatpush1.msra.mxu0 0.0
        %1084 = vmatprep.subr.mxu0 0.0
        %1085 = vmatpush1.msra.mxu0 0.0
        %1086 = vmatprep.subr.mxu0 0.0
        %1087 = vmatpush1.msra.mxu0 0.0
        %1088 = vmatprep.subr.mxu0 0.0
        %1089 = vmatpush1.msra.mxu0 0.0
        %1090 = vmatprep.subr.mxu0 0.0
        %1091 = vmatpush1.msra.mxu0 0.0
        %1092 = vmatprep.subr.mxu0 0.0
        %1093 = vmatpush1.msra.mxu0 0.0
        %1094 = vmatprep.subr.mxu0 0.0
        %1095 = vmatpush1.msra.mxu0 0.0
        %1096 = vmatprep.subr.mxu0 0.0
        %1097 = vmatpush1.msra.mxu0 0.0
        %1098 = vmatprep.subr.mxu0 0.0
        %1099 = vmatpush1.msra.mxu0 0.0
        %1100 = vmatprep.subr.mxu0 0.0
        %1101 = vmatpush1.msra.mxu0 0.0
        %1102 = vmatprep.subr.mxu0 0.0
        %1103 = vmatpush1.msra.mxu0 0.0
        %1104 = vmatprep.mubr.f32.mxu0 0.0
        %1105 = vmatmul.mubr.f32.gmra.mrb[0].mxu0 %v1038
        %v1106 = vpop.f32.mrb[0].mxu0
        %v1107 = vadd.f32 0.0, %v1106
        %v1108 = vpop.f32.mrb[0].mxu0
        %1109 = vdwg.mxu0
        %1111 = vrot.lane.b32.xlu0 %v777, 8
        %v1112 = vpop.permute.xlu0 %1111
        %1115 = vrot.lane.b32.xlu0 %v942, 16
        %v1116 = vpop.permute.xlu0 %1115
        %1119 = vrot.lane.b32.xlu0 %v1107, 24
        %v1120 = vpop.permute.xlu0 %1119
        %v1122 = vsel %vm453, %v612, %v1112
        %vm1123 = vcmask 130048
        %v1124 = vsel %vm1123, %v1122, %v1116
        %vm1125 = vcmask 195584
        %v1126 = vsel %vm1125, %v1124, %v1120
        %v1127 = vld [vmem:[#allocation5] sm:$0xff]
        %v1128 = vld [vmem:[#allocation5 + $0x8] sm:$0xff]
        %v1129 = vld [vmem:[#allocation5 + $0x10] sm:$0xff]
        %v1130 = vld [vmem:[#allocation5 + $0x18] sm:$0xff]
        %v1132 = vsel %vm355, %v1126, 0
        %1134 = vmatprep.subr.mxu0 0.0
        %1135 = vmatpush1.msra.mxu0 %v1127
        %1136 = vmatprep.subr.mxu0 0.0
        %1137 = vmatpush1.msra.mxu0 %v1128
        %1138 = vmatprep.subr.mxu0 0.0
        %1139 = vmatpush1.msra.mxu0 %v1129
        %1140 = vmatprep.subr.mxu0 0.0
        %1141 = vmatpush1.msra.mxu0 %v1130
        %1142 = vmatprep.subr.mxu0 0.0
        %1143 = vmatpush1.msra.mxu0 0.0
        %1144 = vmatprep.subr.mxu0 0.0
        %1145 = vmatpush1.msra.mxu0 0.0
        %1146 = vmatprep.subr.mxu0 0.0
        %1147 = vmatpush1.msra.mxu0 0.0
        %1148 = vmatprep.subr.mxu0 0.0
        %1149 = vmatpush1.msra.mxu0 0.0
        %1150 = vmatprep.subr.mxu0 0.0
        %1151 = vmatpush1.msra.mxu0 0.0
        %1152 = vmatprep.subr.mxu0 0.0
        %1153 = vmatpush1.msra.mxu0 0.0
        %1154 = vmatprep.subr.mxu0 0.0
        %1155 = vmatpush1.msra.mxu0 0.0
        %1156 = vmatprep.subr.mxu0 0.0
        %1157 = vmatpush1.msra.mxu0 0.0
        %1158 = vmatprep.subr.mxu0 0.0
        %1159 = vmatpush1.msra.mxu0 0.0
        %1160 = vmatprep.subr.mxu0 0.0
        %1161 = vmatpush1.msra.mxu0 0.0
        %1162 = vmatprep.subr.mxu0 0.0
        %1163 = vmatpush1.msra.mxu0 0.0
        %1164 = vmatprep.subr.mxu0 0.0
        %1165 = vmatpush1.msra.mxu0 0.0
        %1166 = vmatprep.subr.mxu0 0.0
        %1167 = vmatpush1.msra.mxu0 0.0
        %1168 = vmatprep.subr.mxu0 0.0
        %1169 = vmatpush1.msra.mxu0 0.0
        %1170 = vmatprep.subr.mxu0 0.0
        %1171 = vmatpush1.msra.mxu0 0.0
        %1172 = vmatprep.subr.mxu0 0.0
        %1173 = vmatpush1.msra.mxu0 0.0
        %1174 = vmatprep.subr.mxu0 0.0
        %1175 = vmatpush1.msra.mxu0 0.0
        %1176 = vmatprep.subr.mxu0 0.0
        %1177 = vmatpush1.msra.mxu0 0.0
        %1178 = vmatprep.subr.mxu0 0.0
        %1179 = vmatpush1.msra.mxu0 0.0
        %1180 = vmatprep.subr.mxu0 0.0
        %1181 = vmatpush1.msra.mxu0 0.0
        %1182 = vmatprep.subr.mxu0 0.0
        %1183 = vmatpush1.msra.mxu0 0.0
        %1184 = vmatprep.subr.mxu0 0.0
        %1185 = vmatpush1.msra.mxu0 0.0
        %1186 = vmatprep.subr.mxu0 0.0
        %1187 = vmatpush1.msra.mxu0 0.0
        %1188 = vmatprep.subr.mxu0 0.0
        %1189 = vmatpush1.msra.mxu0 0.0
        %1190 = vmatprep.subr.mxu0 0.0
        %1191 = vmatpush1.msra.mxu0 0.0
        %1192 = vmatprep.subr.mxu0 0.0
        %1193 = vmatpush1.msra.mxu0 0.0
        %1194 = vmatprep.subr.mxu0 0.0
        %1195 = vmatpush1.msra.mxu0 0.0
        %1196 = vmatprep.subr.mxu0 0.0
        %1197 = vmatpush1.msra.mxu0 0.0
        %1198 = vmatprep.mubr.f32.mxu0 0.0
        %1199 = vmatmul.mubr.f32.gmra.mrb[0].mxu0 %v1132
        %v1200 = vpop.f32.mrb[0].mxu0
        %v1201 = vadd.f32 %v352, %v1200
        %v1202 = vpop.f32.mrb[0].mxu0
        %1203 = vdwg.mxu0
        %v1204 = vadd.f32 %v343, %v1201
        %v1205 = vsel %vm355, %v1204, 0.0
        %1206 = vadd.xlane.f32.xlu0 %v1205
        %v1207 = vpop.xlane.xlu0 %1206
        %v1208 = vmul.f32 %v1207, %v359
        %v1209 = vsub.f32 %v1204, %v1208
        %v1210 = vmul.f32 %v1209, %v1209
        %v1211 = vsel %vm355, %v1210, 0.0
        %1212 = vadd.xlane.f32.xlu0 %v1211
        %v1213 = vpop.xlane.xlu0 %1212
        %v1214 = vmul.f32 %v1213, %v359
        %v1215 = vadd.f32 %v1214, 1e-05
        %v1216 = vrsqrt.pop %v1215
        %v1217 = vmul.f32 %v1209, %v1216
        %v1218 = vmul.f32 %v1217, %v348
        %v1219 = vadd.f32 %v1218, %v350
        %v1220 = vld [vmem:[#allocation7] sm:$0xff]
        %v1221 = vld [vmem:[#allocation7 + $0x8] sm:$0xff]
        %v1222 = vld [vmem:[#allocation7 + $0x10] sm:$0xff]
        %v1223 = vld [vmem:[#allocation7 + $0x18] sm:$0xff]
        %v1224 = vld [vmem:[%s5] sm:$0xff]
        %v1226 = vsel %vm355, %v1219, 0
        %1228 = vmatprep.subr.mxu0 0.0
        %1229 = vmatpush1.msra.mxu0 %v1220
        %1230 = vmatprep.subr.mxu0 0.0
        %1231 = vmatpush1.msra.mxu0 %v1221
        %1232 = vmatprep.subr.mxu0 0.0
        %1233 = vmatpush1.msra.mxu0 %v1222
        %1234 = vmatprep.subr.mxu0 0.0
        %1235 = vmatpush1.msra.mxu0 %v1223
        %1236 = vmatprep.subr.mxu0 0.0
        %1237 = vmatpush1.msra.mxu0 0.0
        %1238 = vmatprep.subr.mxu0 0.0
        %1239 = vmatpush1.msra.mxu0 0.0
        %1240 = vmatprep.subr.mxu0 0.0
        %1241 = vmatpush1.msra.mxu0 0.0
        %1242 = vmatprep.subr.mxu0 0.0
        %1243 = vmatpush1.msra.mxu0 0.0
        %1244 = vmatprep.subr.mxu0 0.0
        %1245 = vmatpush1.msra.mxu0 0.0
        %1246 = vmatprep.subr.mxu0 0.0
        %1247 = vmatpush1.msra.mxu0 0.0
        %1248 = vmatprep.subr.mxu0 0.0
        %1249 = vmatpush1.msra.mxu0 0.0
        %1250 = vmatprep.subr.mxu0 0.0
        %1251 = vmatpush1.msra.mxu0 0.0
        %1252 = vmatprep.subr.mxu0 0.0
        %1253 = vmatpush1.msra.mxu0 0.0
        %1254 = vmatprep.subr.mxu0 0.0
        %1255 = vmatpush1.msra.mxu0 0.0
        %1256 = vmatprep.subr.mxu0 0.0
        %1257 = vmatpush1.msra.mxu0 0.0
        %1258 = vmatprep.subr.mxu0 0.0
        %1259 = vmatpush1.msra.mxu0 0.0
        %1260 = vmatprep.subr.mxu0 0.0
        %1261 = vmatpush1.msra.mxu0 0.0
        %1262 = vmatprep.subr.mxu0 0.0
        %1263 = vmatpush1.msra.mxu0 0.0
        %1264 = vmatprep.subr.mxu0 0.0
        %1265 = vmatpush1.msra.mxu0 0.0
        %1266 = vmatprep.subr.mxu0 0.0
        %1267 = vmatpush1.msra.mxu0 0.0
        %1268 = vmatprep.subr.mxu0 0.0
        %1269 = vmatpush1.msra.mxu0 0.0
        %1270 = vmatprep.subr.mxu0 0.0
        %1271 = vmatpush1.msra.mxu0 0.0
        %1272 = vmatprep.subr.mxu0 0.0
        %1273 = vmatpush1.msra.mxu0 0.0
        %1274 = vmatprep.subr.mxu0 0.0
        %1275 = vmatpush1.msra.mxu0 0.0
        %1276 = vmatprep.subr.mxu0 0.0
        %1277 = vmatpush1.msra.mxu0 0.0
        %1278 = vmatprep.subr.mxu0 0.0
        %1279 = vmatpush1.msra.mxu0 0.0
        %1280 = vmatprep.subr.mxu0 0.0
        %1281 = vmatpush1.msra.mxu0 0.0
        %1282 = vmatprep.subr.mxu0 0.0
        %1283 = vmatpush1.msra.mxu0 0.0
        %1284 = vmatprep.subr.mxu0 0.0
        %1285 = vmatpush1.msra.mxu0 0.0
        %1286 = vmatprep.subr.mxu0 0.0
        %1287 = vmatpush1.msra.mxu0 0.0
        %1288 = vmatprep.subr.mxu0 0.0
        %1289 = vmatpush1.msra.mxu0 0.0
        %1290 = vmatprep.subr.mxu0 0.0
        %1291 = vmatpush1.msra.mxu0 0.0
        %1292 = vmatprep.mubr.f32.mxu0 0.0
        %1293 = vmatmul.mubr.f32.gmra.mrb[0].mxu0 %v1226
        %v1294 = vpop.f32.mrb[0].mxu0
        %v1295 = vadd.f32 %v1224, %v1294
        %v1296 = vpop.f32.mrb[0].mxu0
        %1297 = vdwg.mxu0
        %v1298 = vmax.f32 %v1295, 0.0
        %v1299 = vld [vmem:[%s6] sm:$0xff]
        %v1300 = vld [vmem:[%s6 + $0x8] sm:$0xff]
        %v1301 = vld [vmem:[%s6 + $0x10] sm:$0xff]
        %v1302 = vld [vmem:[%s6 + $0x18] sm:$0xff]
        %v1303 = vld [vmem:[%s6 + $0x20] sm:$0xff]
        %v1304 = vld [vmem:[%s6 + $0x28] sm:$0xff]
        %v1305 = vld [vmem:[%s6 + $0x30] sm:$0xff]
        %v1306 = vld [vmem:[%s6 + $0x38] sm:$0xff]
        %vm1307 = vcmask 523264
        %v1309 = vsel %vm1307, %v1298, 0
        %1311 = vmatprep.subr.mxu0 0.0
        %1312 = vmatpush1.msra.mxu0 %v1299
        %1313 = vmatprep.subr.mxu0 0.0
        %1314 = vmatpush1.msra.mxu0 %v1300
        %1315 = vmatprep.subr.mxu0 0.0
        %1316 = vmatpush1.msra.mxu0 %v1301
        %1317 = vmatprep.subr.mxu0 0.0
        %1318 = vmatpush1.msra.mxu0 %v1302
        %1319 = vmatprep.subr.mxu0 0.0
        %1320 = vmatpush1.msra.mxu0 %v1303
        %1321 = vmatprep.subr.mxu0 0.0
        %1322 = vmatpush1.msra.mxu0 %v1304
        %1323 = vmatprep.subr.mxu0 0.0
        %1324 = vmatpush1.msra.mxu0 %v1305
        %1325 = vmatprep.subr.mxu0 0.0
        %1326 = vmatpush1.msra.mxu0 %v1306
        %1327 = vmatprep.subr.mxu0 0.0
        %1328 = vmatpush1.msra.mxu0 0.0
        %1329 = vmatprep.subr.mxu0 0.0
        %1330 = vmatpush1.msra.mxu0 0.0
        %1331 = vmatprep.subr.mxu0 0.0
        %1332 = vmatpush1.msra.mxu0 0.0
        %1333 = vmatprep.subr.mxu0 0.0
        %1334 = vmatpush1.msra.mxu0 0.0
        %1335 = vmatprep.subr.mxu0 0.0
        %1336 = vmatpush1.msra.mxu0 0.0
        %1337 = vmatprep.subr.mxu0 0.0
        %1338 = vmatpush1.msra.mxu0 0.0
        %1339 = vmatprep.subr.mxu0 0.0
        %1340 = vmatpush1.msra.mxu0 0.0
        %1341 = vmatprep.subr.mxu0 0.0
        %1342 = vmatpush1.msra.mxu0 0.0
        %1343 = vmatprep.subr.mxu0 0.0
        %1344 = vmatpush1.msra.mxu0 0.0
        %1345 = vmatprep.subr.mxu0 0.0
        %1346 = vmatpush1.msra.mxu0 0.0
        %1347 = vmatprep.subr.mxu0 0.0
        %1348 = vmatpush1.msra.mxu0 0.0
        %1349 = vmatprep.subr.mxu0 0.0
        %1350 = vmatpush1.msra.mxu0 0.0
        %1351 = vmatprep.subr.mxu0 0.0
        %1352 = vmatpush1.msra.mxu0 0.0
        %1353 = vmatprep.subr.mxu0 0.0
        %1354 = vmatpush1.msra.mxu0 0.0
        %1355 = vmatprep.subr.mxu0 0.0
        %1356 = vmatpush1.msra.mxu0 0.0
        %1357 = vmatprep.subr.mxu0 0.0
        %1358 = vmatpush1.msra.mxu0 0.0
        %1359 = vmatprep.subr.mxu0 0.0
        %1360 = vmatpush1.msra.mxu0 0.0
        %1361 = vmatprep.subr.mxu0 0.0
        %1362 = vmatpush1.msra.mxu0 0.0
        %1363 = vmatprep.subr.mxu0 0.0
        %1364 = vmatpush1.msra.mxu0 0.0
        %1365 = vmatprep.subr.mxu0 0.0
        %1366 = vmatpush1.msra.mxu0 0.0
        %1367 = vmatprep.subr.mxu0 0.0
        %1368 = vmatpush1.msra.mxu0 0.0
        %1369 = vmatprep.subr.mxu0 0.0
        %1370 = vmatpush1.msra.mxu0 0.0
        %1371 = vmatprep.subr.mxu0 0.0
        %1372 = vmatpush1.msra.mxu0 0.0
        %1373 = vmatprep.subr.mxu0 0.0
        %1374 = vmatpush1.msra.mxu0 0.0
        %1375 = vmatprep.mubr.f32.mxu0 0.0
        %1376 = vmatmul.mubr.f32.gmra.mrb[0].mxu0 %v1309
        %v1377 = vpop.f32.mrb[0].mxu0
        %v1378 = vadd.f32 %v354, %v1377
        %v1379 = vpop.f32.mrb[0].mxu0
        %1380 = vdwg.mxu0
        %v1381 = vadd.f32 %v1204, %v1378
        %1382 = vst.msk [vmem:[%s338] sm:$0xff] %vm355, %v1381
        %s1383 = sand.u32 %s205, 1
        %s1384 = scalar_lea.sflag [#allocation4], %s1383
        %s1385 = sand.u32 %s205, 1
        %s1386 = smul.addr %s1385, 8
        %s1387 = scalar_lea.vmem [#allocation8], %s1386
        // Predicated region
        $region65: #{tpu_custom_call.1} parent=51 // pred_check
          %p1388 = pneg %p215
        $region66: #{tpu_custom_call.1} parent=51 // pred_check_branch
          %1390 = sbr.rel (%p1388) target = $region68
        $region67: #{tpu_custom_call.1} parent=51 // pred_region
          %s1392 = ssub.s32 128, 128
          %1393 = vsyncadd %s1384, %s1392
          %s1394 = smul.addr %s24, 128
          %s1395 = scalar_lea.hbm %s8, %s1394
          %s1397 = sshll.u32 %s1387, 4
          %s1398 = int_to_ptr.vmem [resolvable:$true] %s1397
          %1400 = dma.vmem_to_hbm [thread:$0]  %s1398, 128, %s1395, %s1384
        $region68: #{tpu_custom_call.1} parent=51 // pred_fallthru
          _
      $region52: #{tpu_custom_call.1} parent=5 // pred_fallthru
        _
      %p1401 = scmp.le.s32.totalorder 2, %s19
      // Predicated region
      $region69: #{tpu_custom_call.1} parent=5 // pred_check
        %p1402 = pneg %p1401
      $region70: #{tpu_custom_call.1} parent=5 // pred_check_branch
        %1404 = sbr.rel (%p1402) target = $region72
      $region71: #{tpu_custom_call.1} parent=5 // pred_region
        %s1405 = ssub.s32 %s19, 2
        // Predicated region
        $region73: #{tpu_custom_call.1} parent=71 // pred_check
          %p1406 = pneg %p221
        $region74: #{tpu_custom_call.1} parent=71 // pred_check_branch
          %1408 = sbr.rel (%p1406) target = $region76
        $region75: #{tpu_custom_call.1} parent=71 // pred_region
          %s1409 = sand.u32 %s206, 1
          %s1410 = scalar_lea.sflag [#allocation4], %s1409
          %s1411 = sand.u32 %s206, 1
          %s1412 = smul.addr %s1411, 8
          %s1413 = scalar_lea.vmem [#allocation8], %s1412
          %1414 = dma.done %s1410, 128
        $region76: #{tpu_custom_call.1} parent=71 // pred_fallthru
          _
      $region72: #{tpu_custom_call.1} parent=5 // pred_fallthru
        _
    $region6: #{tpu_custom_call.1} parent=1 // loop_footer
      %s23 = sadd.s32 1, %s19
    $region7: #{tpu_custom_call.1} parent=1 // loop_footer_branch
      %18 = sbr.rel target = $region3
    $region8: #{tpu_custom_call.1} parent=1 // loop_exit
      _
    %1415 = vsyncpa [#allocation3], 1
    %s1416 = scalar_lea.sflag [#allocation3], 1
    %1417 = vsyncpa %s1416, 1
    %1418 = vsyncpa [#allocation6], 1
    %1419 = vsyncpa [#allocation4], 1
    %s1420 = scalar_lea.sflag [#allocation4], 1
    %1421 = vsyncpa %s1420, 1

</llo_original>
